<compile_context>
chip_gen: v7x
topology: tpu7x:2x2x1
jax: 0.10.0
libtpu: 0.0.40
codegen_flags: <defaults>
</compile_context>

<pallas_src>
import functools
import math

import jax
import jax.numpy as jnp
from jax import lax
from jax.experimental import pallas as pl
from jax.experimental.pallas import tpu as pltpu

_SUB = 16  # bf16 sublane packing quantum (2 rows per 32-bit sublane)


def _round_up(x, m):
    return (x + m - 1) // m * m


def _vmem_limit_bytes():
    """Generation-aware scoped VMEM limit."""
    cap = None
    try:
        cap = getattr(pltpu.get_tpu_info(), "vmem_capacity_bytes", None)
    except Exception:  # pragma: no cover - info query unavailable
        cap = None
    if not cap:
        return 32 * 1024 * 1024
    if cap >= 128 * 1024 * 1024:        # v5e / v6e: 128 MiB physical VMEM
        return 100 * 1024 * 1024
    return min(32 * 1024 * 1024, cap // 2)   # v7x-class: 64 MiB physical


def _choose_cout_tile(coutp, kcin, k, vmem_bytes):
    """Largest multiple-of-128 divisor of coutp whose bf16 weight tile fits
    a fraction of the VMEM budget (bounds weight residency for wide layers)."""
    budget = max(2 << 20, vmem_bytes // 8)
    q = coutp // 128
    for d in range(q, 0, -1):
        if q % d == 0 and k * kcin * (128 * d) * 2 <= budget:
            return 128 * d
    return 128


def _choose_row_tile(n_outer, h, wp, tn, *, max_block_bytes, min_steps=8):
    """Largest divisor of h whose f32 output block fits the byte budget and
    that still leaves >= min_steps grid steps for DMA/compute pipelining."""
    divisors = [d for d in range(h, 0, -1) if h % d == 0]
    fitting = [d for d in divisors
               if d * wp * tn * 4 <= max_block_bytes] or [1]
    for th in fitting:                       # descending (biggest tile first)
        if n_outer * (h // th) >= min_steps:
            return th
    return fitting[0]


def _choose_affine_tile(m, coutp, budget_bytes):
    """Largest divisor of m that is a multiple of 8 and fits the byte budget
    (big tiles for the purely HBM-bound affine/LeakyReLU pass)."""
    target = max(8, budget_bytes // (coutp * 4))
    best = 0
    for d in range(1, int(math.isqrt(m)) + 1):
        if m % d == 0:
            for t in (d, m // d):
                if t <= target and t % 8 == 0 and t > best:
                    best = t
    if best == 0:                            # m is always a multiple of 16
        best = 8 if m % 8 == 0 else m
    return best


# ----------------------------------------------------------------------------
# Pallas kernels
# ----------------------------------------------------------------------------
def _conv_rows_kernel(*refs, k, wp, rows, has_bias, with_stats):
    # refs (in order): x, w, [bias], [colmask], out_y, [out_stats]
    #   x: (FLAT, K*Cin) bf16 — full width-im2col'd padded image (resident)
    #   w: (K, K*Cin, TN) bf16
    #   bias: (1, TN) f32                (only when has_bias)
    #   colmask: (rows, 1) f32           (only when with_stats; 1=valid column)
    #   out_y: (rows, TN) f32            one row-tile of the padded-width output
    #   out_stats: (2, TN) f32           per-step per-channel (sum, sumsq)
    it = iter(refs)
    x_ref = next(it)
    w_ref = next(it)
    b_ref = next(it) if has_bias else None
    m_ref = next(it) if with_stats else None
    o_ref = next(it)
    s_ref = next(it) if with_stats else None

    r = pl.program_id(2)
    base = pl.multiple_of(r * rows, _SUB)

    # Value accumulation: exactly one store to o_ref per grid step.
    acc = jnp.dot(x_ref[pl.ds(base, rows), :], w_ref[0],
                  preferred_element_type=jnp.float32)
    for dy in range(1, k):
        off = pl.multiple_of(base + dy * wp, _SUB)   # aligned: wp % 16 == 0
        acc = acc + jnp.dot(x_ref[pl.ds(off, rows), :], w_ref[dy],
                            preferred_element_type=jnp.float32)
    if has_bias:
        acc = acc + b_ref[...]
    o_ref[...] = acc.astype(o_ref.dtype)

    if with_stats:
        # Fused BN batch-stat partials from the f32 accumulator (junk columns
        # masked out); avoids extra full-HBM passes over the conv output.
        masked = acc * m_ref[...]
        s_ref[0:1, :] = jnp.sum(masked, axis=0, keepdims=True)
        s_ref[1:2, :] = jnp.sum(masked * acc, axis=0, keepdims=True)


def _affine_leaky_kernel(y_ref, scale_ref, shift_ref, o_ref, *, slope):
    # Fused BN-apply (scale/shift precomputed from batch stats) + LeakyReLU.
    z = y_ref[...] * scale_ref[...] + shift_ref[...]
    o_ref[...] = jnp.maximum(z, slope * z)


# ----------------------------------------------------------------------------
# Wrappers
# ----------------------------------------------------------------------------
def conv2d_same_pallas(x_nhwc, w_hwio, bias=None, *, with_stats=False):
    """K x K, stride-1, 'same'-padding conv.

    x: (N, H, W, Cin) f32, w: (K, K, Cin, Cout) f32, bias: (Cout,) or None.
    Returns (y_pad, stats, (wp, Coutp)):
      y_pad: (N, H*wp, Coutp) f32, columns >= W and channels >= Cout are junk;
      stats: (steps, 2, Coutp) per-step per-channel (sum, sumsq) over valid
             columns, or None when with_stats=False.
    """
    n, h, wd, cin = x_nhwc.shape
    k = w_hwio.shape[0]
    assert w_hwio.shape[:3] == (k, k, cin), w_hwio.shape
    assert k % 2 == 1, "only odd kernel sizes with stride 1 are supported"
    p = k // 2
    cout = w_hwio.shape[-1]
    coutp = _round_up(cout, 128)            # lane-dense output stores
    kcin = k * cin

    wp = _round_up(wd + 2 * p, _SUB)        # padded width, bf16 sublane aligned
    hp = h + 2 * p
    flat = hp * wp

    # Generation-aware VMEM budgets.
    vmem = _vmem_limit_bytes()
    big_part = vmem > (48 << 20)
    tn = _choose_cout_tile(coutp, kcin, k, vmem)
    n_j = coutp // tn

    img_bytes = flat * kcin * 2             # resident bf16 im2col image
    w_bytes = k * kcin * tn * 2             # bf16 weight tile
    avail = vmem - 2 * (img_bytes + w_bytes) - (2 << 20)
    block_cap = (12 << 20) if big_part else (3 << 20)
    max_block = max(512 << 10, min(block_cap, avail // 3))

    th = _choose_row_tile(n * n_j, h, wp, tn, max_block_bytes=max_block)
    rows = th * wp
    n_r = h // th

    # Width-only im2col in JAX (layout plumbing): K column-shifted copies
    # concatenated on the channel axis, then flattened to (FLAT, K*Cin) bf16.
    extra_right = wp + (k - 1) - (wd + 2 * p)
    xp = jnp.pad(x_nhwc, ((0, 0), (p, p), (p, p + extra_right), (0, 0)))
    xcol = jnp.concatenate([xp[:, :, dx:dx + wp, :] for dx in range(k)],
                           axis=-1)
    xcol = xcol.reshape(n, flat, kcin).astype(jnp.bfloat16)

    wq = jnp.pad(w_hwio.astype(jnp.float32),
                 ((0, 0), (0, 0), (0, 0), (0, coutp - cout)))
    wq = wq.reshape(k, kcin, coutp).astype(jnp.bfloat16)

    has_bias = bias is not None
    inputs = [xcol, wq]
    in_specs = [
        # full per-image block; index constant along the row/channel axes so
        # it stays resident in VMEM across those steps.
        pl.BlockSpec((None, flat, kcin), lambda b, j, r: (b, 0, 0)),
        pl.BlockSpec((k, kcin, tn), lambda b, j, r: (0, 0, j)),
    ]
    if has_bias:
        bq = jnp.pad(bias.astype(jnp.float32),
                     (0, coutp - cout)).reshape(1, coutp)
        inputs.append(bq)
        in_specs.append(pl.BlockSpec((1, tn), lambda b, j, r: (0, j)))
    if with_stats:
        colmask = (jnp.arange(wp) < wd).astype(jnp.float32)
        rowmask = jnp.tile(colmask, th).reshape(rows, 1)
        inputs.append(rowmask)
        in_specs.append(pl.BlockSpec((rows, 1), lambda b, j, r: (0, 0)))

    out_shapes = [jax.ShapeDtypeStruct((n, h * wp, coutp), jnp.float32)]
    out_specs = [pl.BlockSpec((None, rows, tn), lambda b, j, r: (b, r, j))]
    if with_stats:
        out_shapes.append(
            jax.ShapeDtypeStruct((n * n_r, 2, coutp), jnp.float32))
        out_specs.append(
            pl.BlockSpec((None, 2, tn), lambda b, j, r: (b * n_r + r, 0, j)))

    kern = functools.partial(_conv_rows_kernel, k=k, wp=wp, rows=rows,
                             has_bias=has_bias, with_stats=with_stats)
    outs = pl.pallas_call(
        kern,
        out_shape=out_shapes,
        grid=(n, n_j, n_r),
        in_specs=in_specs,
        out_specs=out_specs,
        compiler_params=pltpu.CompilerParams(
            # No cross-step accumulation anywhere -> all axes parallel
            # (lets dual-TC parts shard the row axis too).
            dimension_semantics=("parallel", "parallel", "parallel"),
            vmem_limit_bytes=vmem,
        ),
    )(*inputs)
    y_pad = outs[0]
    stats = outs[1] if with_stats else None
    return y_pad, stats, (wp, coutp)


def batchnorm_leaky_pallas(y_pad, stats, cout, w_valid, wp, gamma, beta,
                           *, eps=1e-5, slope=0.1):
    """Training-mode BN (batch stats from fused conv partials) + LeakyReLU."""
    n, hw, coutp = y_pad.shape
    h = hw // wp
    count = float(n * h * w_valid)

    # Finish mean / biased variance (like PyTorch's forward normalization)
    # from the tiny per-step partial sums — no extra HBM pass over y_pad.
    s = jnp.sum(stats, axis=0)                       # (2, coutp)
    mean = s[0, :cout] / count
    var = jnp.maximum(s[1, :cout] / count - mean * mean, 0.0)
    scale = gamma.astype(jnp.float32) * lax.rsqrt(var + eps)
    shift = beta.astype(jnp.float32) - mean * scale
    scale = jnp.pad(scale, (0, coutp - cout)).reshape(1, coutp)
    shift = jnp.pad(shift, (0, coutp - cout)).reshape(1, coutp)

    m = n * hw
    vmem = _vmem_limit_bytes()
    budget = (4 << 20) if vmem > (48 << 20) else (2 << 20)
    tm = _choose_affine_tile(m, coutp, budget)
    out = pl.pallas_call(
        functools.partial(_affine_leaky_kernel, slope=slope),
        out_shape=jax.ShapeDtypeStruct((m, coutp), jnp.float32),
        grid=(m // tm,),
        in_specs=[
            pl.BlockSpec((tm, coutp), lambda i: (i, 0)),
            pl.BlockSpec((1, coutp), lambda i: (0, 0)),
            pl.BlockSpec((1, coutp), lambda i: (0, 0)),
        ],
        out_specs=pl.BlockSpec((tm, coutp), lambda i: (i, 0)),
        compiler_params=pltpu.CompilerParams(
            dimension_semantics=("parallel",),
            vmem_limit_bytes=vmem,
        ),
    )(y_pad.reshape(m, coutp), scale, shift)
    return out.reshape(n, hw, coutp)


def cnn_block_forward(x_nchw, params, *, bn_act=True, eps=1e-5, slope=0.1):
    """CNNBlock forward.  x: (N, Cin, H, W) f32.  Returns (N, Cout, H, W)."""
    x = jnp.transpose(x_nchw, (0, 2, 3, 1)).astype(jnp.float32)
    n, h, wd, _ = x.shape
    cout = params["w"].shape[-1]

    bias = None if bn_act else params["b"]          # Conv2d(bias=not bn_act)
    y_pad, stats, (wp, coutp) = conv2d_same_pallas(x, params["w"], bias,
                                                   with_stats=bn_act)
    if bn_act:
        # TODO(synk): PyTorch training-mode BN also updates running stats
        # (unbiased variance); forward output parity only here.
        y_pad = batchnorm_leaky_pallas(y_pad, stats, cout, wd, wp,
                                       params["gamma"], params["beta"],
                                       eps=eps, slope=slope)
    y = y_pad.reshape(n, h, wp, coutp)[:, :, :wd, :cout]   # crop junk cols/ch
    return jnp.transpose(y, (0, 3, 1, 2))


# ----------------------------------------------------------------------------
# Pure-JAX reference (f32) for validation
# ----------------------------------------------------------------------------
def cnn_block_reference(x_nchw, params, *, bn_act=True, eps=1e-5, slope=0.1):
    x = jnp.transpose(x_nchw, (0, 2, 3, 1)).astype(jnp.float32)
    y = lax.conv_general_dilated(
        x, params["w"], (1, 1), "SAME",
        dimension_numbers=("NHWC", "HWIO", "NHWC"))
    if bn_act:
        mean = jnp.mean(y, axis=(0, 1, 2))
        var = jnp.mean(jnp.square(y - mean), axis=(0, 1, 2))
        y = (y - mean) * lax.rsqrt(var + eps) * params["gamma"] + params["beta"]
        y = jnp.where(y > 0, y, slope * y)
    else:
        y = y + params["b"]
    return jnp.transpose(y, (0, 3, 1, 2))


if __name__ == "__main__":
    key = jax.random.PRNGKey(0)
    kx, kw, kb, kg, kbe = jax.random.split(key, 5)

    n, cin, spatial, cout, k = 2, 32, 16, 64, 3
    x = jax.random.normal(kx, (n, cin, spatial, spatial), jnp.float32)
    params = {
        # weights stored HWIO: (K, K, Cin, Cout)
        "w": (jax.random.normal(kw, (k, k, cin, cout), jnp.float32)
              / jnp.sqrt(float(k * k * cin))),
        "b": 0.05 * jax.random.normal(kb, (cout,), jnp.float32),
        "gamma": 1.0 + 0.1 * jax.random.normal(kg, (cout,), jnp.float32),
        "beta": 0.1 * jax.random.normal(kbe, (cout,), jnp.float32),
    }

    fwd_bn = jax.jit(lambda xx, pp: cnn_block_forward(xx, pp, bn_act=True))
    fwd_nb = jax.jit(lambda xx, pp: cnn_block_forward(xx, pp, bn_act=False))

    # bn_act=True path: conv (no bias) -> BN(train) -> LeakyReLU(0.1)
    out = jax.block_until_ready(fwd_bn(x, params))
    assert out.shape == (n, cout, spatial, spatial), out.shape
    ref = jax.block_until_ready(cnn_block_reference(x, params, bn_act=True))
    err = float(jnp.max(jnp.abs(out - ref)))
    if not bool(jnp.allclose(out, ref, atol=5e-2, rtol=5e-2)):
        raise AssertionError(f"bn_act=True mismatch, max abs err = {err}")

    # bn_act=False path: conv with bias only
    out2 = jax.block_until_ready(fwd_nb(x, params))
    assert out2.shape == (n, cout, spatial, spatial), out2.shape
    ref2 = jax.block_until_ready(cnn_block_reference(x, params, bn_act=False))
    err2 = float(jnp.max(jnp.abs(out2 - ref2)))
    if not bool(jnp.allclose(out2, ref2, atol=5e-2, rtol=5e-2)):
        raise AssertionError(f"bn_act=False mismatch, max abs err = {err2}")

    print("KERNEL_OK")
</pallas_src>

<mosaic_0001>
module attributes {stable_mosaic.version = 11 : i64} {
  func.func @_conv_rows_kernel(%arg0: i32, %arg1: i32, %arg2: i32, %arg3: memref<1x576x96xbf16, #tpu.memory_space<vmem>>, %arg4: memref<3x96x128xbf16, #tpu.memory_space<vmem>>, %arg5: memref<128x1xf32, #tpu.memory_space<vmem>>, %arg6: memref<1x128x128xf32, #tpu.memory_space<vmem>>, %arg7: memref<1x2x128xf32, #tpu.memory_space<vmem>>) attributes {dimension_semantics = [#tpu.dimension_semantics<parallel>, #tpu.dimension_semantics<parallel>, #tpu.dimension_semantics<parallel>], iteration_bounds = array<i64: 2, 1, 4>, scalar_prefetch = 0 : i64, scratch_operands = 0 : i64, tpu.core_type = #tpu.core_type<tc>, window_params = [{transform_indices = @transform_0, window_bounds = array<i64: 1, 576, 96>}, {transform_indices = @transform_1, window_bounds = array<i64: 3, 96, 128>}, {pipeline_mode = #tpu.pipeline_mode<synchronous>, transform_indices = @transform_2, window_bounds = array<i64: 128, 1>}, {transform_indices = @transform_3, window_bounds = array<i64: 1, 128, 128>}, {transform_indices = @transform_4, window_bounds = array<i64: 1, 2, 128>}]} {
    %c128_i32 = arith.constant 128 : i32
    %0 = arith.muli %arg2, %c128_i32 : i32
    %1 = tpu.assume_multiple %0, 16 : i32
    %c0 = arith.constant 0 : index
    %2 = arith.index_cast %1 : i32 to index
    %c0_0 = arith.constant 0 : index
    %3 = vector.load %arg3[%c0, %2, %c0_0] : memref<1x576x96xbf16, #tpu.memory_space<vmem>>, vector<1x128x96xbf16>
    %4 = vector.shape_cast %3 : vector<1x128x96xbf16> to vector<128x96xbf16>
    %c0_1 = arith.constant 0 : index
    %c0_2 = arith.constant 0 : index
    %c0_3 = arith.constant 0 : index
    %5 = vector.load %arg4[%c0_1, %c0_2, %c0_3] : memref<3x96x128xbf16, #tpu.memory_space<vmem>>, vector<1x96x128xbf16>
    %6 = vector.shape_cast %5 : vector<1x96x128xbf16> to vector<96x128xbf16>
    %cst = arith.constant dense<0.000000e+00> : vector<128x128xf32>
    %7 = tpu.matmul %4, %6, %cst {dimension_numbers = #tpu.dot_dimension_numbers<[1], [0], [0], [1], [0, 0, 1, 1], [], []>} : vector<128x96xbf16>, vector<96x128xbf16>, vector<128x128xf32> -> vector<128x128xf32>
    %c32_i32 = arith.constant 32 : i32
    %8 = arith.addi %1, %c32_i32 : i32
    %9 = tpu.assume_multiple %8, 16 : i32
    %c0_4 = arith.constant 0 : index
    %10 = arith.index_cast %9 : i32 to index
    %c0_5 = arith.constant 0 : index
    %11 = vector.load %arg3[%c0_4, %10, %c0_5] : memref<1x576x96xbf16, #tpu.memory_space<vmem>>, vector<1x128x96xbf16>
    %12 = vector.shape_cast %11 : vector<1x128x96xbf16> to vector<128x96xbf16>
    %c1 = arith.constant 1 : index
    %c0_6 = arith.constant 0 : index
    %c0_7 = arith.constant 0 : index
    %13 = vector.load %arg4[%c1, %c0_6, %c0_7] : memref<3x96x128xbf16, #tpu.memory_space<vmem>>, vector<1x96x128xbf16>
    %14 = vector.shape_cast %13 : vector<1x96x128xbf16> to vector<96x128xbf16>
    %cst_8 = arith.constant dense<0.000000e+00> : vector<128x128xf32>
    %15 = tpu.matmul %12, %14, %cst_8 {dimension_numbers = #tpu.dot_dimension_numbers<[1], [0], [0], [1], [0, 0, 1, 1], [], []>} : vector<128x96xbf16>, vector<96x128xbf16>, vector<128x128xf32> -> vector<128x128xf32>
    %16 = arith.addf %7, %15 : vector<128x128xf32>
    %c64_i32 = arith.constant 64 : i32
    %17 = arith.addi %1, %c64_i32 : i32
    %18 = tpu.assume_multiple %17, 16 : i32
    %c0_9 = arith.constant 0 : index
    %19 = arith.index_cast %18 : i32 to index
    %c0_10 = arith.constant 0 : index
    %20 = vector.load %arg3[%c0_9, %19, %c0_10] : memref<1x576x96xbf16, #tpu.memory_space<vmem>>, vector<1x128x96xbf16>
    %21 = vector.shape_cast %20 : vector<1x128x96xbf16> to vector<128x96xbf16>
    %c2 = arith.constant 2 : index
    %c0_11 = arith.constant 0 : index
    %c0_12 = arith.constant 0 : index
    %22 = vector.load %arg4[%c2, %c0_11, %c0_12] : memref<3x96x128xbf16, #tpu.memory_space<vmem>>, vector<1x96x128xbf16>
    %23 = vector.shape_cast %22 : vector<1x96x128xbf16> to vector<96x128xbf16>
    %cst_13 = arith.constant dense<0.000000e+00> : vector<128x128xf32>
    %24 = tpu.matmul %21, %23, %cst_13 {dimension_numbers = #tpu.dot_dimension_numbers<[1], [0], [0], [1], [0, 0, 1, 1], [], []>} : vector<128x96xbf16>, vector<96x128xbf16>, vector<128x128xf32> -> vector<128x128xf32>
    %25 = arith.addf %16, %24 : vector<128x128xf32>
    %c0_14 = arith.constant 0 : index
    %c0_15 = arith.constant 0 : index
    %c0_16 = arith.constant 0 : index
    %26 = vector.load %arg6[%c0_14, %c0_15, %c0_16] : memref<1x128x128xf32, #tpu.memory_space<vmem>>, vector<1x128x128xf32>
    %27 = vector.shape_cast %26 : vector<1x128x128xf32> to vector<128x128xf32>
    %28 = vector.shape_cast %25 : vector<128x128xf32> to vector<1x128x128xf32>
    tpu.vector_store %arg6[%c0_14, %c0_15, %c0_16], %28 {strides = array<i32>} : memref<1x128x128xf32, #tpu.memory_space<vmem>>, vector<1x128x128xf32>,
    %c0_17 = arith.constant 0 : index
    %c0_18 = arith.constant 0 : index
    %29 = vector.load %arg5[%c0_17, %c0_18] : memref<128x1xf32, #tpu.memory_space<vmem>>, vector<128x1xf32>
    %30 = vector.broadcast %29 : vector<128x1xf32> to vector<128x128xf32>
    %31 = arith.mulf %25, %30 : vector<128x128xf32>
    %cst_19 = arith.constant dense<0.000000e+00> : vector<128xf32>
    %32 = vector.multi_reduction <add>, %31, %cst_19 [0] : vector<128x128xf32> to vector<128xf32>
    %33 = vector.shape_cast %32 : vector<128xf32> to vector<1x128xf32>
    %c0_20 = arith.constant 0 : index
    %c0_21 = arith.constant 0 : index
    %c0_22 = arith.constant 0 : index
    %34 = vector.load %arg7[%c0_20, %c0_21, %c0_22] : memref<1x2x128xf32, #tpu.memory_space<vmem>>, vector<1x1x128xf32>
    %35 = vector.shape_cast %34 : vector<1x1x128xf32> to vector<1x128xf32>
    %36 = vector.shape_cast %33 : vector<1x128xf32> to vector<1x1x128xf32>
    tpu.vector_store %arg7[%c0_20, %c0_21, %c0_22], %36 {strides = array<i32>} : memref<1x2x128xf32, #tpu.memory_space<vmem>>, vector<1x1x128xf32>,
    %37 = arith.mulf %31, %25 : vector<128x128xf32>
    %cst_23 = arith.constant dense<0.000000e+00> : vector<128xf32>
    %38 = vector.multi_reduction <add>, %37, %cst_23 [0] : vector<128x128xf32> to vector<128xf32>
    %39 = vector.shape_cast %38 : vector<128xf32> to vector<1x128xf32>
    %c0_24 = arith.constant 0 : index
    %c1_25 = arith.constant 1 : index
    %c0_26 = arith.constant 0 : index
    %40 = vector.load %arg7[%c0_24, %c1_25, %c0_26] : memref<1x2x128xf32, #tpu.memory_space<vmem>>, vector<1x1x128xf32>
    %41 = vector.shape_cast %40 : vector<1x1x128xf32> to vector<1x128xf32>
    %42 = vector.shape_cast %39 : vector<1x128xf32> to vector<1x1x128xf32>
    tpu.vector_store %arg7[%c0_24, %c1_25, %c0_26], %42 {strides = array<i32>} : memref<1x2x128xf32, #tpu.memory_space<vmem>>, vector<1x1x128xf32>,
    return
  }
  func.func @transform_0(%arg0: i32, %arg1: i32, %arg2: i32) -> (i32, i32, i32) {
    %c0_i32 = arith.constant 0 : i32
    %c0_i32_0 = arith.constant 0 : i32
    %c0_i32_1 = arith.constant 0 : i32
    return %arg0, %c0_i32, %c0_i32_0 : i32, i32, i32
  }
  func.func @transform_1(%arg0: i32, %arg1: i32, %arg2: i32) -> (i32, i32, i32) {
    %c0_i32 = arith.constant 0 : i32
    %c0_i32_0 = arith.constant 0 : i32
    %c0_i32_1 = arith.constant 0 : i32
    return %c0_i32, %c0_i32_0, %arg1 : i32, i32, i32
  }
  func.func @transform_2(%arg0: i32, %arg1: i32, %arg2: i32) -> (i32, i32) {
    %c0_i32 = arith.constant 0 : i32
    %c0_i32_0 = arith.constant 0 : i32
    %c0_i32_1 = arith.constant 0 : i32
    return %c0_i32, %c0_i32_0 : i32, i32
  }
  func.func @transform_3(%arg0: i32, %arg1: i32, %arg2: i32) -> (i32, i32, i32) {
    %c0_i32 = arith.constant 0 : i32
    return %arg0, %arg2, %arg1 : i32, i32, i32
  }
  func.func @transform_4(%arg0: i32, %arg1: i32, %arg2: i32) -> (i32, i32, i32) {
    %c4_i32 = arith.constant 4 : i32
    %0 = arith.muli %arg0, %c4_i32 : i32
    %1 = arith.addi %0, %arg2 : i32
    %c0_i32 = arith.constant 0 : i32
    %c0_i32_0 = arith.constant 0 : i32
    return %1, %c0_i32, %arg1 : i32, i32, i32
  }
}

module attributes {stable_mosaic.version = 11 : i64} {
  func.func @_affine_leaky_kernel(%arg0: i32, %arg1: memref<1024x128xf32, #tpu.memory_space<vmem>>, %arg2: memref<1x128xf32, #tpu.memory_space<vmem>>, %arg3: memref<1x128xf32, #tpu.memory_space<vmem>>, %arg4: memref<1024x128xf32, #tpu.memory_space<vmem>>) attributes {dimension_semantics = [#tpu.dimension_semantics<parallel>], iteration_bounds = array<i64: 1>, scalar_prefetch = 0 : i64, scratch_operands = 0 : i64, tpu.core_type = #tpu.core_type<tc>, window_params = [{transform_indices = @transform_0, window_bounds = array<i64: 1024, 128>}, {pipeline_mode = #tpu.pipeline_mode<synchronous>, transform_indices = @transform_1, window_bounds = array<i64: 1, 128>}, {pipeline_mode = #tpu.pipeline_mode<synchronous>, transform_indices = @transform_2, window_bounds = array<i64: 1, 128>}, {transform_indices = @transform_3, window_bounds = array<i64: 1024, 128>}]} {
    %c0 = arith.constant 0 : index
    %c0_0 = arith.constant 0 : index
    %0 = vector.load %arg1[%c0, %c0_0] : memref<1024x128xf32, #tpu.memory_space<vmem>>, vector<1024x128xf32>
    %c0_1 = arith.constant 0 : index
    %c0_2 = arith.constant 0 : index
    %1 = vector.load %arg2[%c0_1, %c0_2] : memref<1x128xf32, #tpu.memory_space<vmem>>, vector<1x128xf32>
    %2 = vector.broadcast %1 : vector<1x128xf32> to vector<1024x128xf32>
    %3 = arith.mulf %0, %2 : vector<1024x128xf32>
    %c0_3 = arith.constant 0 : index
    %c0_4 = arith.constant 0 : index
    %4 = vector.load %arg3[%c0_3, %c0_4] : memref<1x128xf32, #tpu.memory_space<vmem>>, vector<1x128xf32>
    %5 = vector.broadcast %4 : vector<1x128xf32> to vector<1024x128xf32>
    %6 = arith.addf %3, %5 : vector<1024x128xf32>
    %cst = arith.constant 1.000000e-01 : f32
    %7 = vector.broadcast %cst : f32 to vector<1024x128xf32>
    %8 = arith.mulf %7, %6 : vector<1024x128xf32>
    %9 = arith.maximumf %6, %8 : vector<1024x128xf32>
    %c0_5 = arith.constant 0 : index
    %c0_6 = arith.constant 0 : index
    %10 = vector.load %arg4[%c0_5, %c0_6] : memref<1024x128xf32, #tpu.memory_space<vmem>>, vector<1024x128xf32>
    tpu.vector_store %arg4[%c0_5, %c0_6], %9 {strides = array<i32>} : memref<1024x128xf32, #tpu.memory_space<vmem>>, vector<1024x128xf32>,
    return
  }
  func.func @transform_0(%arg0: i32) -> (i32, i32) {
    %c0_i32 = arith.constant 0 : i32
    %c0_i32_0 = arith.constant 0 : i32
    return %arg0, %c0_i32 : i32, i32
  }
  func.func @transform_1(%arg0: i32) -> (i32, i32) {
    %c0_i32 = arith.constant 0 : i32
    %c0_i32_0 = arith.constant 0 : i32
    %c0_i32_1 = arith.constant 0 : i32
    return %c0_i32, %c0_i32_0 : i32, i32
  }
  func.func @transform_2(%arg0: i32) -> (i32, i32) {
    %c0_i32 = arith.constant 0 : i32
    %c0_i32_0 = arith.constant 0 : i32
    %c0_i32_1 = arith.constant 0 : i32
    return %c0_i32, %c0_i32_0 : i32, i32
  }
  func.func @transform_3(%arg0: i32) -> (i32, i32) {
    %c0_i32 = arith.constant 0 : i32
    %c0_i32_0 = arith.constant 0 : i32
    return %arg0, %c0_i32 : i32, i32
  }
}

</mosaic_0001>

<llo_original>
// kernel: tile.8
$region0: #{tile.8}
  #allocation0 [shape = 's32[1]{0}', space=sflag, size = 0x4, scoped, tag = 'scoped memory for tile.8']
  %s0 = inlined_call_operand.vmem [shape: f32[32], index: 0, kind: input, shape index: {}]
  %s1 = inlined_call_operand.vmem [shape: f32[4,32], index: 1, kind: output, shape index: {}]
  // Predicated region
  $region2: #{tile.8} parent=0 // pred_check
    _
  $region3: #{tile.8} parent=0 // pred_check_branch
    %3 = sbr.rel (0) target = $region5
  $region4: #{tile.8} parent=0 // pred_region
    _
  $region5: #{tile.8} parent=0 // pred_fallthru
    _
  %v4 = vld [vmem:[%s0] ss:$0 sm:$0xff]
  %5 = vst [vmem:[%s1] sm:$0xf] %v4

// kernel: tile.0
$region0: #{tile.0}
  %s0 = inlined_call_operand.vmem [shape: f32[4,32], index: 0, kind: input, shape index: {}]
  %s1 = inlined_call_operand.vmem [shape: f32[128,1], index: 1, kind: output, shape index: {}]
  $region1: #{tile.0} parent=0
    #allocation0 [shape = 'u8[4096]{0}', space=vmem, size = 0x1000, scoped, tag = 'scoped mem for input reshape']
    %s3 = sshllo.u32 0, 4
    %v4 = vld [vmem:[%s0] sm:%s3]
    %5 = vst [vmem:[#allocation0] sm:%s3] %v4
    %v6 = vld [vmem:[#allocation0] sm:$0xf]
    %vm7 = vcmask 7168
    %8 = vst.msk [vmem:[%s1] sm:$0x1] %vm7, %v6
    %s9 = scalar_lea.vmem %s1, 31
    %10 = vst.msk [vmem:[%s9] sm:$0x2] %vm7, %v6
    %s11 = scalar_lea.vmem %s1, 62
    %12 = vst.msk [vmem:[%s11] sm:$0x4] %vm7, %v6
    %s13 = scalar_lea.vmem %s1, 93
    %14 = vst.msk [vmem:[%s13] sm:$0x8] %vm7, %v6
    %v15 = vld [vmem:[#allocation0] sm:$0xf]
    %16 = vrot.lane.b32.xlu0 %v15, 127
    %v17 = vpop.permute.xlu0 %16
    %vm18 = vcmask 7168
    %s19 = scalar_lea.vmem %s1, 1
    %20 = vst.msk [vmem:[%s19] sm:$0x1] %vm18, %v17
    %s21 = scalar_lea.vmem %s1, 32
    %22 = vst.msk [vmem:[%s21] sm:$0x2] %vm18, %v17
    %s23 = scalar_lea.vmem %s1, 63
    %24 = vst.msk [vmem:[%s23] sm:$0x4] %vm18, %v17
    %s25 = scalar_lea.vmem %s1, 94
    %26 = vst.msk [vmem:[%s25] sm:$0x8] %vm18, %v17
    %v27 = vld [vmem:[#allocation0] sm:$0xf]
    %28 = vrot.lane.b32.xlu0 %v27, 126
    %v29 = vpop.permute.xlu0 %28
    %vm30 = vcmask 7168
    %s31 = scalar_lea.vmem %s1, 2
    %32 = vst.msk [vmem:[%s31] sm:$0x1] %vm30, %v29
    %s33 = scalar_lea.vmem %s1, 33
    %34 = vst.msk [vmem:[%s33] sm:$0x2] %vm30, %v29
    %s35 = scalar_lea.vmem %s1, 64
    %36 = vst.msk [vmem:[%s35] sm:$0x4] %vm30, %v29
    %s37 = scalar_lea.vmem %s1, 95
    %38 = vst.msk [vmem:[%s37] sm:$0x8] %vm30, %v29
    %v39 = vld [vmem:[#allocation0] sm:$0xf]
    %40 = vrot.lane.b32.xlu0 %v39, 125
    %v41 = vpop.permute.xlu0 %40
    %vm42 = vcmask 7168
    %s43 = scalar_lea.vmem %s1, 3
    %44 = vst.msk [vmem:[%s43] sm:$0x1] %vm42, %v41
    %s45 = scalar_lea.vmem %s1, 34
    %46 = vst.msk [vmem:[%s45] sm:$0x2] %vm42, %v41
    %s47 = scalar_lea.vmem %s1, 65
    %48 = vst.msk [vmem:[%s47] sm:$0x4] %vm42, %v41
    %s49 = scalar_lea.vmem %s1, 96
    %50 = vst.msk [vmem:[%s49] sm:$0x8] %vm42, %v41
    %v51 = vld [vmem:[#allocation0] sm:$0xf]
    %52 = vrot.lane.b32.xlu0 %v51, 124
    %v53 = vpop.permute.xlu0 %52
    %vm54 = vcmask 7168
    %s55 = scalar_lea.vmem %s1, 4
    %56 = vst.msk [vmem:[%s55] sm:$0x1] %vm54, %v53
    %s57 = scalar_lea.vmem %s1, 35
    %58 = vst.msk [vmem:[%s57] sm:$0x2] %vm54, %v53
    %s59 = scalar_lea.vmem %s1, 66
    %60 = vst.msk [vmem:[%s59] sm:$0x4] %vm54, %v53
    %s61 = scalar_lea.vmem %s1, 97
    %62 = vst.msk [vmem:[%s61] sm:$0x8] %vm54, %v53
    %v63 = vld [vmem:[#allocation0] sm:$0xf]
    %64 = vrot.lane.b32.xlu0 %v63, 123
    %v65 = vpop.permute.xlu0 %64
    %vm66 = vcmask 7168
    %s67 = scalar_lea.vmem %s1, 5
    %68 = vst.msk [vmem:[%s67] sm:$0x1] %vm66, %v65
    %s69 = scalar_lea.vmem %s1, 36
    %70 = vst.msk [vmem:[%s69] sm:$0x2] %vm66, %v65
    %s71 = scalar_lea.vmem %s1, 67
    %72 = vst.msk [vmem:[%s71] sm:$0x4] %vm66, %v65
    %s73 = scalar_lea.vmem %s1, 98
    %74 = vst.msk [vmem:[%s73] sm:$0x8] %vm66, %v65
    %v75 = vld [vmem:[#allocation0] sm:$0xf]
    %76 = vrot.lane.b32.xlu0 %v75, 122
    %v77 = vpop.permute.xlu0 %76
    %vm78 = vcmask 7168
    %s79 = scalar_lea.vmem %s1, 6
    %80 = vst.msk [vmem:[%s79] sm:$0x1] %vm78, %v77
    %s81 = scalar_lea.vmem %s1, 37
    %82 = vst.msk [vmem:[%s81] sm:$0x2] %vm78, %v77
    %s83 = scalar_lea.vmem %s1, 68
    %84 = vst.msk [vmem:[%s83] sm:$0x4] %vm78, %v77
    %s85 = scalar_lea.vmem %s1, 99
    %86 = vst.msk [vmem:[%s85] sm:$0x8] %vm78, %v77
    %v87 = vld [vmem:[#allocation0] sm:$0xf]
    %88 = vrot.lane.b32.xlu0 %v87, 121
    %v89 = vpop.permute.xlu0 %88
    %vm90 = vcmask 7168
    %s91 = scalar_lea.vmem %s1, 7
    %92 = vst.msk [vmem:[%s91] sm:$0x1] %vm90, %v89
    %s93 = scalar_lea.vmem %s1, 38
    %94 = vst.msk [vmem:[%s93] sm:$0x2] %vm90, %v89
    %s95 = scalar_lea.vmem %s1, 69
    %96 = vst.msk [vmem:[%s95] sm:$0x4] %vm90, %v89
    %s97 = scalar_lea.vmem %s1, 100
    %98 = vst.msk [vmem:[%s97] sm:$0x8] %vm90, %v89
    %v99 = vld [vmem:[#allocation0] sm:$0xf]
    %100 = vrot.lane.b32.xlu0 %v99, 120
    %v101 = vpop.permute.xlu0 %100
    %vm102 = vcmask 7168
    %s103 = scalar_lea.vmem %s1, 8
    %104 = vst.msk [vmem:[%s103] sm:$0x1] %vm102, %v101
    %s105 = scalar_lea.vmem %s1, 39
    %106 = vst.msk [vmem:[%s105] sm:$0x2] %vm102, %v101
    %s107 = scalar_lea.vmem %s1, 70
    %108 = vst.msk [vmem:[%s107] sm:$0x4] %vm102, %v101
    %s109 = scalar_lea.vmem %s1, 101
    %110 = vst.msk [vmem:[%s109] sm:$0x8] %vm102, %v101
    %v111 = vld [vmem:[#allocation0] sm:$0xf]
    %112 = vrot.lane.b32.xlu0 %v111, 119
    %v113 = vpop.permute.xlu0 %112
    %vm114 = vcmask 7168
    %s115 = scalar_lea.vmem %s1, 9
    %116 = vst.msk [vmem:[%s115] sm:$0x1] %vm114, %v113
    %s117 = scalar_lea.vmem %s1, 40
    %118 = vst.msk [vmem:[%s117] sm:$0x2] %vm114, %v113
    %s119 = scalar_lea.vmem %s1, 71
    %120 = vst.msk [vmem:[%s119] sm:$0x4] %vm114, %v113
    %s121 = scalar_lea.vmem %s1, 102
    %122 = vst.msk [vmem:[%s121] sm:$0x8] %vm114, %v113
    %v123 = vld [vmem:[#allocation0] sm:$0xf]
    %124 = vrot.lane.b32.xlu0 %v123, 118
    %v125 = vpop.permute.xlu0 %124
    %vm126 = vcmask 7168
    %s127 = scalar_lea.vmem %s1, 10
    %128 = vst.msk [vmem:[%s127] sm:$0x1] %vm126, %v125
    %s129 = scalar_lea.vmem %s1, 41
    %130 = vst.msk [vmem:[%s129] sm:$0x2] %vm126, %v125
    %s131 = scalar_lea.vmem %s1, 72
    %132 = vst.msk [vmem:[%s131] sm:$0x4] %vm126, %v125
    %s133 = scalar_lea.vmem %s1, 103
    %134 = vst.msk [vmem:[%s133] sm:$0x8] %vm126, %v125
    %v135 = vld [vmem:[#allocation0] sm:$0xf]
    %136 = vrot.lane.b32.xlu0 %v135, 117
    %v137 = vpop.permute.xlu0 %136
    %vm138 = vcmask 7168
    %s139 = scalar_lea.vmem %s1, 11
    %140 = vst.msk [vmem:[%s139] sm:$0x1] %vm138, %v137
    %s141 = scalar_lea.vmem %s1, 42
    %142 = vst.msk [vmem:[%s141] sm:$0x2] %vm138, %v137
    %s143 = scalar_lea.vmem %s1, 73
    %144 = vst.msk [vmem:[%s143] sm:$0x4] %vm138, %v137
    %s145 = scalar_lea.vmem %s1, 104
    %146 = vst.msk [vmem:[%s145] sm:$0x8] %vm138, %v137
    %v147 = vld [vmem:[#allocation0] sm:$0xf]
    %148 = vrot.lane.b32.xlu0 %v147, 116
    %v149 = vpop.permute.xlu0 %148
    %vm150 = vcmask 7168
    %s151 = scalar_lea.vmem %s1, 12
    %152 = vst.msk [vmem:[%s151] sm:$0x1] %vm150, %v149
    %s153 = scalar_lea.vmem %s1, 43
    %154 = vst.msk [vmem:[%s153] sm:$0x2] %vm150, %v149
    %s155 = scalar_lea.vmem %s1, 74
    %156 = vst.msk [vmem:[%s155] sm:$0x4] %vm150, %v149
    %s157 = scalar_lea.vmem %s1, 105
    %158 = vst.msk [vmem:[%s157] sm:$0x8] %vm150, %v149
    %v159 = vld [vmem:[#allocation0] sm:$0xf]
    %160 = vrot.lane.b32.xlu0 %v159, 115
    %v161 = vpop.permute.xlu0 %160
    %vm162 = vcmask 7168
    %s163 = scalar_lea.vmem %s1, 13
    %164 = vst.msk [vmem:[%s163] sm:$0x1] %vm162, %v161
    %s165 = scalar_lea.vmem %s1, 44
    %166 = vst.msk [vmem:[%s165] sm:$0x2] %vm162, %v161
    %s167 = scalar_lea.vmem %s1, 75
    %168 = vst.msk [vmem:[%s167] sm:$0x4] %vm162, %v161
    %s169 = scalar_lea.vmem %s1, 106
    %170 = vst.msk [vmem:[%s169] sm:$0x8] %vm162, %v161
    %v171 = vld [vmem:[#allocation0] sm:$0xf]
    %172 = vrot.lane.b32.xlu0 %v171, 114
    %v173 = vpop.permute.xlu0 %172
    %vm174 = vcmask 7168
    %s175 = scalar_lea.vmem %s1, 14
    %176 = vst.msk [vmem:[%s175] sm:$0x1] %vm174, %v173
    %s177 = scalar_lea.vmem %s1, 45
    %178 = vst.msk [vmem:[%s177] sm:$0x2] %vm174, %v173
    %s179 = scalar_lea.vmem %s1, 76
    %180 = vst.msk [vmem:[%s179] sm:$0x4] %vm174, %v173
    %s181 = scalar_lea.vmem %s1, 107
    %182 = vst.msk [vmem:[%s181] sm:$0x8] %vm174, %v173
    %v183 = vld [vmem:[#allocation0] sm:$0xf]
    %184 = vrot.lane.b32.xlu0 %v183, 113
    %v185 = vpop.permute.xlu0 %184
    %vm186 = vcmask 7168
    %s187 = scalar_lea.vmem %s1, 15
    %188 = vst.msk [vmem:[%s187] sm:$0x1] %vm186, %v185
    %s189 = scalar_lea.vmem %s1, 46
    %190 = vst.msk [vmem:[%s189] sm:$0x2] %vm186, %v185
    %s191 = scalar_lea.vmem %s1, 77
    %192 = vst.msk [vmem:[%s191] sm:$0x4] %vm186, %v185
    %s193 = scalar_lea.vmem %s1, 108
    %194 = vst.msk [vmem:[%s193] sm:$0x8] %vm186, %v185
    %v195 = vld [vmem:[#allocation0] sm:$0xf]
    %196 = vrot.lane.b32.xlu0 %v195, 112
    %v197 = vpop.permute.xlu0 %196
    %vm198 = vcmask 7168
    %s199 = scalar_lea.vmem %s1, 16
    %200 = vst.msk [vmem:[%s199] sm:$0x1] %vm198, %v197
    %s201 = scalar_lea.vmem %s1, 47
    %202 = vst.msk [vmem:[%s201] sm:$0x2] %vm198, %v197
    %s203 = scalar_lea.vmem %s1, 78
    %204 = vst.msk [vmem:[%s203] sm:$0x4] %vm198, %v197
    %s205 = scalar_lea.vmem %s1, 109
    %206 = vst.msk [vmem:[%s205] sm:$0x8] %vm198, %v197
    %v207 = vld [vmem:[#allocation0] sm:$0xf]
    %208 = vrot.lane.b32.xlu0 %v207, 111
    %v209 = vpop.permute.xlu0 %208
    %vm210 = vcmask 7168
    %s211 = scalar_lea.vmem %s1, 17
    %212 = vst.msk [vmem:[%s211] sm:$0x1] %vm210, %v209
    %s213 = scalar_lea.vmem %s1, 48
    %214 = vst.msk [vmem:[%s213] sm:$0x2] %vm210, %v209
    %s215 = scalar_lea.vmem %s1, 79
    %216 = vst.msk [vmem:[%s215] sm:$0x4] %vm210, %v209
    %s217 = scalar_lea.vmem %s1, 110
    %218 = vst.msk [vmem:[%s217] sm:$0x8] %vm210, %v209
    %v219 = vld [vmem:[#allocation0] sm:$0xf]
    %220 = vrot.lane.b32.xlu0 %v219, 110
    %v221 = vpop.permute.xlu0 %220
    %vm222 = vcmask 7168
    %s223 = scalar_lea.vmem %s1, 18
    %224 = vst.msk [vmem:[%s223] sm:$0x1] %vm222, %v221
    %s225 = scalar_lea.vmem %s1, 49
    %226 = vst.msk [vmem:[%s225] sm:$0x2] %vm222, %v221
    %s227 = scalar_lea.vmem %s1, 80
    %228 = vst.msk [vmem:[%s227] sm:$0x4] %vm222, %v221
    %s229 = scalar_lea.vmem %s1, 111
    %230 = vst.msk [vmem:[%s229] sm:$0x8] %vm222, %v221
    %v231 = vld [vmem:[#allocation0] sm:$0xf]
    %232 = vrot.lane.b32.xlu0 %v231, 109
    %v233 = vpop.permute.xlu0 %232
    %vm234 = vcmask 7168
    %s235 = scalar_lea.vmem %s1, 19
    %236 = vst.msk [vmem:[%s235] sm:$0x1] %vm234, %v233
    %s237 = scalar_lea.vmem %s1, 50
    %238 = vst.msk [vmem:[%s237] sm:$0x2] %vm234, %v233
    %s239 = scalar_lea.vmem %s1, 81
    %240 = vst.msk [vmem:[%s239] sm:$0x4] %vm234, %v233
    %s241 = scalar_lea.vmem %s1, 112
    %242 = vst.msk [vmem:[%s241] sm:$0x8] %vm234, %v233
    %v243 = vld [vmem:[#allocation0] sm:$0xf]
    %244 = vrot.lane.b32.xlu0 %v243, 108
    %v245 = vpop.permute.xlu0 %244
    %vm246 = vcmask 7168
    %s247 = scalar_lea.vmem %s1, 20
    %248 = vst.msk [vmem:[%s247] sm:$0x1] %vm246, %v245
    %s249 = scalar_lea.vmem %s1, 51
    %250 = vst.msk [vmem:[%s249] sm:$0x2] %vm246, %v245
    %s251 = scalar_lea.vmem %s1, 82
    %252 = vst.msk [vmem:[%s251] sm:$0x4] %vm246, %v245
    %s253 = scalar_lea.vmem %s1, 113
    %254 = vst.msk [vmem:[%s253] sm:$0x8] %vm246, %v245
    %v255 = vld [vmem:[#allocation0] sm:$0xf]
    %256 = vrot.lane.b32.xlu0 %v255, 107
    %v257 = vpop.permute.xlu0 %256
    %vm258 = vcmask 7168
    %s259 = scalar_lea.vmem %s1, 21
    %260 = vst.msk [vmem:[%s259] sm:$0x1] %vm258, %v257
    %s261 = scalar_lea.vmem %s1, 52
    %262 = vst.msk [vmem:[%s261] sm:$0x2] %vm258, %v257
    %s263 = scalar_lea.vmem %s1, 83
    %264 = vst.msk [vmem:[%s263] sm:$0x4] %vm258, %v257
    %s265 = scalar_lea.vmem %s1, 114
    %266 = vst.msk [vmem:[%s265] sm:$0x8] %vm258, %v257
    %v267 = vld [vmem:[#allocation0] sm:$0xf]
    %268 = vrot.lane.b32.xlu0 %v267, 106
    %v269 = vpop.permute.xlu0 %268
    %vm270 = vcmask 7168
    %s271 = scalar_lea.vmem %s1, 22
    %272 = vst.msk [vmem:[%s271] sm:$0x1] %vm270, %v269
    %s273 = scalar_lea.vmem %s1, 53
    %274 = vst.msk [vmem:[%s273] sm:$0x2] %vm270, %v269
    %s275 = scalar_lea.vmem %s1, 84
    %276 = vst.msk [vmem:[%s275] sm:$0x4] %vm270, %v269
    %s277 = scalar_lea.vmem %s1, 115
    %278 = vst.msk [vmem:[%s277] sm:$0x8] %vm270, %v269
    %v279 = vld [vmem:[#allocation0] sm:$0xf]
    %280 = vrot.lane.b32.xlu0 %v279, 105
    %v281 = vpop.permute.xlu0 %280
    %vm282 = vcmask 7168
    %s283 = scalar_lea.vmem %s1, 23
    %284 = vst.msk [vmem:[%s283] sm:$0x1] %vm282, %v281
    %s285 = scalar_lea.vmem %s1, 54
    %286 = vst.msk [vmem:[%s285] sm:$0x2] %vm282, %v281
    %s287 = scalar_lea.vmem %s1, 85
    %288 = vst.msk [vmem:[%s287] sm:$0x4] %vm282, %v281
    %s289 = scalar_lea.vmem %s1, 116
    %290 = vst.msk [vmem:[%s289] sm:$0x8] %vm282, %v281
    %v291 = vld [vmem:[#allocation0] sm:$0xf]
    %292 = vrot.lane.b32.xlu0 %v291, 104
    %v293 = vpop.permute.xlu0 %292
    %vm294 = vcmask 7168
    %s295 = scalar_lea.vmem %s1, 24
    %296 = vst.msk [vmem:[%s295] sm:$0x1] %vm294, %v293
    %s297 = scalar_lea.vmem %s1, 55
    %298 = vst.msk [vmem:[%s297] sm:$0x2] %vm294, %v293
    %s299 = scalar_lea.vmem %s1, 86
    %300 = vst.msk [vmem:[%s299] sm:$0x4] %vm294, %v293
    %s301 = scalar_lea.vmem %s1, 117
    %302 = vst.msk [vmem:[%s301] sm:$0x8] %vm294, %v293
    %v303 = vld [vmem:[#allocation0] sm:$0xf]
    %304 = vrot.lane.b32.xlu0 %v303, 103
    %v305 = vpop.permute.xlu0 %304
    %vm306 = vcmask 7168
    %s307 = scalar_lea.vmem %s1, 25
    %308 = vst.msk [vmem:[%s307] sm:$0x1] %vm306, %v305
    %s309 = scalar_lea.vmem %s1, 56
    %310 = vst.msk [vmem:[%s309] sm:$0x2] %vm306, %v305
    %s311 = scalar_lea.vmem %s1, 87
    %312 = vst.msk [vmem:[%s311] sm:$0x4] %vm306, %v305
    %s313 = scalar_lea.vmem %s1, 118
    %314 = vst.msk [vmem:[%s313] sm:$0x8] %vm306, %v305
    %v315 = vld [vmem:[#allocation0] sm:$0xf]
    %316 = vrot.lane.b32.xlu0 %v315, 102
    %v317 = vpop.permute.xlu0 %316
    %vm318 = vcmask 7168
    %s319 = scalar_lea.vmem %s1, 26
    %320 = vst.msk [vmem:[%s319] sm:$0x1] %vm318, %v317
    %s321 = scalar_lea.vmem %s1, 57
    %322 = vst.msk [vmem:[%s321] sm:$0x2] %vm318, %v317
    %s323 = scalar_lea.vmem %s1, 88
    %324 = vst.msk [vmem:[%s323] sm:$0x4] %vm318, %v317
    %s325 = scalar_lea.vmem %s1, 119
    %326 = vst.msk [vmem:[%s325] sm:$0x8] %vm318, %v317
    %v327 = vld [vmem:[#allocation0] sm:$0xf]
    %328 = vrot.lane.b32.xlu0 %v327, 101
    %v329 = vpop.permute.xlu0 %328
    %vm330 = vcmask 7168
    %s331 = scalar_lea.vmem %s1, 27
    %332 = vst.msk [vmem:[%s331] sm:$0x1] %vm330, %v329
    %s333 = scalar_lea.vmem %s1, 58
    %334 = vst.msk [vmem:[%s333] sm:$0x2] %vm330, %v329
    %s335 = scalar_lea.vmem %s1, 89
    %336 = vst.msk [vmem:[%s335] sm:$0x4] %vm330, %v329
    %s337 = scalar_lea.vmem %s1, 120
    %338 = vst.msk [vmem:[%s337] sm:$0x8] %vm330, %v329
    %v339 = vld [vmem:[#allocation0] sm:$0xf]
    %340 = vrot.lane.b32.xlu0 %v339, 100
    %v341 = vpop.permute.xlu0 %340
    %vm342 = vcmask 7168
    %s343 = scalar_lea.vmem %s1, 28
    %344 = vst.msk [vmem:[%s343] sm:$0x1] %vm342, %v341
    %s345 = scalar_lea.vmem %s1, 59
    %346 = vst.msk [vmem:[%s345] sm:$0x2] %vm342, %v341
    %s347 = scalar_lea.vmem %s1, 90
    %348 = vst.msk [vmem:[%s347] sm:$0x4] %vm342, %v341
    %s349 = scalar_lea.vmem %s1, 121
    %350 = vst.msk [vmem:[%s349] sm:$0x8] %vm342, %v341
    %v351 = vld [vmem:[#allocation0] sm:$0xf]
    %352 = vrot.lane.b32.xlu0 %v351, 99
    %v353 = vpop.permute.xlu0 %352
    %vm354 = vcmask 7168
    %s355 = scalar_lea.vmem %s1, 29
    %356 = vst.msk [vmem:[%s355] sm:$0x1] %vm354, %v353
    %s357 = scalar_lea.vmem %s1, 60
    %358 = vst.msk [vmem:[%s357] sm:$0x2] %vm354, %v353
    %s359 = scalar_lea.vmem %s1, 91
    %360 = vst.msk [vmem:[%s359] sm:$0x4] %vm354, %v353
    %s361 = scalar_lea.vmem %s1, 122
    %362 = vst.msk [vmem:[%s361] sm:$0x8] %vm354, %v353
    %v363 = vld [vmem:[#allocation0] sm:$0xf]
    %364 = vrot.lane.b32.xlu0 %v363, 98
    %v365 = vpop.permute.xlu0 %364
    %vm366 = vcmask 7168
    %s367 = scalar_lea.vmem %s1, 30
    %368 = vst.msk [vmem:[%s367] sm:$0x1] %vm366, %v365
    %s369 = scalar_lea.vmem %s1, 61
    %370 = vst.msk [vmem:[%s369] sm:$0x2] %vm366, %v365
    %s371 = scalar_lea.vmem %s1, 92
    %372 = vst.msk [vmem:[%s371] sm:$0x4] %vm366, %v365
    %s373 = scalar_lea.vmem %s1, 123
    %374 = vst.msk [vmem:[%s373] sm:$0x8] %vm366, %v365
    %v375 = vld [vmem:[#allocation0] sm:$0xf]
    %376 = vrot.lane.b32.xlu0 %v375, 97
    %v377 = vpop.permute.xlu0 %376
    %vm378 = vcmask 7168
    %s379 = scalar_lea.vmem %s1, 31
    %380 = vst.msk [vmem:[%s379] sm:$0x1] %vm378, %v377
    %s381 = scalar_lea.vmem %s1, 62
    %382 = vst.msk [vmem:[%s381] sm:$0x2] %vm378, %v377
    %s383 = scalar_lea.vmem %s1, 93
    %384 = vst.msk [vmem:[%s383] sm:$0x4] %vm378, %v377
    %s385 = scalar_lea.vmem %s1, 124
    %386 = vst.msk [vmem:[%s385] sm:$0x8] %vm378, %v377

// kernel: _lambda_.2
$region0: #{_lambda_.2}
  #allocation0 [shape = 'u32[]', space=smem, size = 0x4, offset = 0x4, fixed_abs, tag = 'smem constant byte address 0x4 - core index']
  #allocation1 [shape = 'u32[144,128]{1,0:T(1,128)}', space=vmem, size = 0x12000, scoped, tag = 'internal scratch']
  %s0 = inlined_call_operand.vmem [shape: bf16[2,576,96], index: 0, kind: input, shape index: {}]
  %s1 = inlined_call_operand.vmem [shape: bf16[3,96,128], index: 1, kind: input, shape index: {}]
  %s2 = inlined_call_operand.vmem [shape: f32[128,1], index: 2, kind: input, shape index: {}]
  %s3 = inlined_call_operand.vmem [shape: f32[2,512,128], index: 3, kind: output, shape index: {0}]
  %s4 = inlined_call_operand.vmem [shape: f32[8,2,128], index: 4, kind: output, shape index: {1}]
  %5 = xla_tuple %s3, %s4
  %s6 = sld [smem:[#allocation0]]
  $region53: #{_lambda_.2} parent=0
    _
  %s8 = ssub.s32 1, %s6
  %s9 = scalar_select 0, %s8, %s6
  loop: start=0, step=1, limit=10
  $region2: #{_lambda_.2} parent=0 // loop_pre_header
    _
  $region3: #{_lambda_.2} parent=0 // loop_header
    %s11 = sphi 0, %s15
    %p12 = scmp.ge.s32.totalorder %s11, 10
    %s18 = sphi 0, %s37
    %s19 = sphi 0, %s33
    %s20 = sphi 0, %s29
    %s21 = sphi 0, %s18
    %s22 = sphi 0, %s19
    %s23 = sphi 0, %s20
    %s24 = sphi 0, %s21
    %s25 = sphi 0, %s22
    %s26 = sphi 0, %s23
    %s40 = sphi 0, %s42
    %s43 = sphi 0, %s40
    %s44 = sphi 0, %s43
    %s60 = sphi 0, %s44
    %s66 = sphi 0, %s68
    %s69 = sphi 0, %s66
    %s70 = sphi 0, %s69
    %s86 = sphi 0, %s70
    %s90 = sphi 0, %s90
    %s92 = sphi 0, %s90
    %s93 = sphi 0, %s92
    %s107 = sphi 0, %s93
    %s117 = sphi 0, %s119
    %s120 = sphi 0, %s117
    %s121 = sphi 0, %s120
    %s137 = sphi 0, %s121
    %s149 = sphi 0, %s151
    %s152 = sphi 0, %s149
    %s153 = sphi 0, %s152
    %s169 = sphi 0, %s153
  $region4: #{_lambda_.2} parent=0 // loop_header_branch
    %14 = sbr.rel (%p12) target = $region8
  $region5: #{_lambda_.2} parent=0 // loop_body
    %s16 = ssub.s32 %s11, 1
    %s17 = ssub.s32 %s11, 2
    %s27 = sadd.s32 1, %s20
    %p28 = scmp.ge.s32.totalorder %s27, 4
    %s29 = scalar_select %p28, 0, %s27
    %s30 = sadd.s32 1, %s19
    %s31 = scalar_select %p28, %s30, %s19
    %p32 = scmp.ge.s32.totalorder %s31, 1
    %s33 = scalar_select %p32, 0, %s31
    %s34 = sadd.s32 1, %s18
    %s35 = scalar_select %p32, %s34, %s18
    %p36 = scmp.ge.s32.totalorder %s35, 2
    %s37 = scalar_select %p36, 0, %s35
    %s38 = ssub.s32 %s18, %s37
    %p39 = scmp.eq.s32.totalorder %s38, 0
    %s41 = sadd.s32 %s40, 1
    %s42 = scalar_select %p39, %s40, %s41
    %p45 = pneg %p39
    %p46 = scmp.eq.s32.totalorder %s11, 7
    %p47 = por %p45, %p46
    %p48 = scmp.ne.s32.totalorder %s40, %s43
    %p49 = scmp.eq.s32.totalorder %s11, 0
    %p50 = por %p48, %p49
    %p51 = scmp.ne.s32.totalorder %s40, %s43
    %p52 = scmp.eq.s32.totalorder %s16, 7
    %p53 = por %p51, %p52
    %p54 = scmp.ne.s32.totalorder %s43, %s44
    %p55 = scmp.eq.s32.totalorder %s16, 0
    %p56 = por %p54, %p55
    %p57 = scmp.ne.s32.totalorder %s43, %s44
    %p58 = scmp.eq.s32.totalorder %s17, 7
    %p59 = por %p57, %p58
    %p61 = scmp.ne.s32.totalorder %s44, %s60
    %p62 = scmp.eq.s32.totalorder %s17, 0
    %p63 = por %p61, %p62
    %s64 = ssub.s32 %s19, %s33
    %p65 = scmp.eq.s32.totalorder %s64, 0
    %s67 = sadd.s32 %s66, 1
    %s68 = scalar_select %p65, %s66, %s67
    %p71 = pneg %p65
    %p72 = scmp.eq.s32.totalorder %s11, 7
    %p73 = por %p71, %p72
    %p74 = scmp.ne.s32.totalorder %s66, %s69
    %p75 = scmp.eq.s32.totalorder %s11, 0
    %p76 = por %p74, %p75
    %p77 = scmp.ne.s32.totalorder %s66, %s69
    %p78 = scmp.eq.s32.totalorder %s16, 7
    %p79 = por %p77, %p78
    %p80 = scmp.ne.s32.totalorder %s69, %s70
    %p81 = scmp.eq.s32.totalorder %s16, 0
    %p82 = por %p80, %p81
    %p83 = scmp.ne.s32.totalorder %s69, %s70
    %p84 = scmp.eq.s32.totalorder %s17, 7
    %p85 = por %p83, %p84
    %p87 = scmp.ne.s32.totalorder %s70, %s86
    %p88 = scmp.eq.s32.totalorder %s17, 0
    %p89 = por %p87, %p88
    %s91 = sadd.s32 %s90, 1
    %p94 = scmp.eq.s32.totalorder %s11, 7
    %p95 = scmp.ne.s32.totalorder %s90, %s92
    %p96 = scmp.eq.s32.totalorder %s11, 0
    %p97 = por %p95, %p96
    %p98 = scmp.ne.s32.totalorder %s90, %s92
    %p99 = scmp.eq.s32.totalorder %s16, 7
    %p100 = por %p98, %p99
    %p101 = scmp.ne.s32.totalorder %s92, %s93
    %p102 = scmp.eq.s32.totalorder %s16, 0
    %p103 = por %p101, %p102
    %p104 = scmp.ne.s32.totalorder %s92, %s93
    %p105 = scmp.eq.s32.totalorder %s17, 7
    %p106 = por %p104, %p105
    %p108 = scmp.ne.s32.totalorder %s93, %s107
    %p109 = scmp.eq.s32.totalorder %s17, 0
    %p110 = por %p108, %p109
    %s111 = ssub.s32 %s18, %s37
    %s112 = ssub.s32 %s20, %s29
    %s113 = sor.u32 %s111, %s112
    %s114 = ssub.s32 %s19, %s33
    %s115 = sor.u32 %s113, %s114
    %p116 = scmp.eq.s32.totalorder %s115, 0
    %s118 = sadd.s32 %s117, 1
    %s119 = scalar_select %p116, %s117, %s118
    %p122 = pneg %p116
    %p123 = scmp.eq.s32.totalorder %s11, 7
    %p124 = por %p122, %p123
    %p125 = scmp.ne.s32.totalorder %s117, %s120
    %p126 = scmp.eq.s32.totalorder %s11, 0
    %p127 = por %p125, %p126
    %p128 = scmp.ne.s32.totalorder %s117, %s120
    %p129 = scmp.eq.s32.totalorder %s16, 7
    %p130 = por %p128, %p129
    %p131 = scmp.ne.s32.totalorder %s120, %s121
    %p132 = scmp.eq.s32.totalorder %s16, 0
    %p133 = por %p131, %p132
    %p134 = scmp.ne.s32.totalorder %s120, %s121
    %p135 = scmp.eq.s32.totalorder %s17, 7
    %p136 = por %p134, %p135
    %p138 = scmp.ne.s32.totalorder %s121, %s137
    %p139 = scmp.eq.s32.totalorder %s17, 0
    %p140 = por %p138, %p139
    %s141 = smul.u32 %s18, 4
    %s142 = sadd.s32 %s141, %s20
    %s143 = smul.u32 %s37, 4
    %s144 = sadd.s32 %s143, %s29
    %s145 = ssub.s32 %s142, %s144
    %s146 = ssub.s32 %s19, %s33
    %s147 = sor.u32 %s145, %s146
    %p148 = scmp.eq.s32.totalorder %s147, 0
    %s150 = sadd.s32 %s149, 1
    %s151 = scalar_select %p148, %s149, %s150
    %p154 = pneg %p148
    %p155 = scmp.eq.s32.totalorder %s11, 7
    %p156 = por %p154, %p155
    %p157 = scmp.ne.s32.totalorder %s149, %s152
    %p158 = scmp.eq.s32.totalorder %s11, 0
    %p159 = por %p157, %p158
    %p160 = scmp.ne.s32.totalorder %s149, %s152
    %p161 = scmp.eq.s32.totalorder %s16, 7
    %p162 = por %p160, %p161
    %p163 = scmp.ne.s32.totalorder %s152, %s153
    %p164 = scmp.eq.s32.totalorder %s16, 0
    %p165 = por %p163, %p164
    %p166 = scmp.ne.s32.totalorder %s152, %s153
    %p167 = scmp.eq.s32.totalorder %s17, 7
    %p168 = por %p166, %p167
    %p170 = scmp.ne.s32.totalorder %s153, %s169
    %p171 = scmp.eq.s32.totalorder %s17, 0
    %p172 = por %p170, %p171
    %p173 = scmp.le.s32.totalorder 1, %s11
    %p174 = scmp.lt.s32.totalorder %s11, 9
    %p175 = pnand %p173, %p174
    %p176 = pneg %p175
    // Predicated region
    $region9: #{_lambda_.2} parent=5 // pred_check
      _
    $region10: #{_lambda_.2} parent=5 // pred_check_branch
      %178 = sbr.rel (%p175) target = $region12
    $region11: #{_lambda_.2} parent=5 // pred_region
      %s179 = ssub.s32 %s11, 1
      // Predicated region
      $region13: #{_lambda_.2} parent=11 // pred_check
        %p180 = pneg %p82
      $region14: #{_lambda_.2} parent=11 // pred_check_branch
        %182 = sbr.rel (%p180) target = $region16
      $region15: #{_lambda_.2} parent=11 // pred_region
        %p183 = scmp.lt.s32.totalorder %s22, 0
        %s184 = scalar_select %p183, %s22, 0
        %s185 = smul.addr %s184, 4
        %s186 = scalar_lea.vmem %s1, %s185
      $region16: #{_lambda_.2} parent=11 // pred_fallthru
        _
      // Predicated region
      $region17: #{_lambda_.2} parent=11 // pred_check
        %p187 = pneg %p103
      $region18: #{_lambda_.2} parent=11 // pred_check_branch
        %189 = sbr.rel (%p187) target = $region20
      $region19: #{_lambda_.2} parent=11 // pred_region
        _
      $region20: #{_lambda_.2} parent=11 // pred_fallthru
        _
    $region12: #{_lambda_.2} parent=5 // pred_fallthru
      _
    %p190 = scmp.lt.s32.totalorder %s11, 8
    // Predicated region
    $region21: #{_lambda_.2} parent=5 // pred_check
      %p191 = pneg %p190
    $region22: #{_lambda_.2} parent=5 // pred_check_branch
      %193 = sbr.rel (%p191) target = $region24
    $region23: #{_lambda_.2} parent=5 // pred_region
      // Predicated region
      $region25: #{_lambda_.2} parent=23 // pred_check
        %p194 = pneg %p50
      $region26: #{_lambda_.2} parent=23 // pred_check_branch
        %196 = sbr.rel (%p194) target = $region28
      $region27: #{_lambda_.2} parent=23 // pred_region
        %p197 = scmp.lt.s32.totalorder %s18, 1
        %s198 = scalar_select %p197, %s18, 1
        %s199 = smul.addr %s198, 72
        %s200 = smul.addr %s199, 4
        %s201 = scalar_lea.vmem %s0, %s200
      $region28: #{_lambda_.2} parent=23 // pred_fallthru
        _
    $region24: #{_lambda_.2} parent=5 // pred_fallthru
      _
    %p202 = scmp.le.s32.totalorder 1, %s11
    %p203 = scmp.lt.s32.totalorder %s11, 9
    %p204 = pnand %p202, %p203
    %p205 = pneg %p204
    // Predicated region
    $region29: #{_lambda_.2} parent=5 // pred_check
      _
    $region30: #{_lambda_.2} parent=5 // pred_check_branch
      %207 = sbr.rel (%p204) target = $region32
    $region31: #{_lambda_.2} parent=5 // pred_region
      %s208 = ssub.s32 %s11, 1
      %p209 = scmp.lt.s32.totalorder %s21, 1
      %s210 = scalar_select %p209, %s21, 1
      %s211 = smul.addr %s210, 72
      %s212 = smul.addr %s211, 4
      %s213 = scalar_lea.vmem %s0, %s212
      %p214 = pneg %p56
      %p215 = pneg %p53
      %p216 = scmp.lt.s32.totalorder %s22, 0
      %s217 = scalar_select %p216, %s22, 0
      %s218 = smul.addr %s217, 4
      %s219 = scalar_lea.vmem %s1, %s218
      %p220 = pneg %p82
      %p221 = pneg %p79
      %p222 = pneg %p103
      %p223 = pneg %p100
      %p224 = pneg %p133
      %p225 = pneg %p130
      %s226 = smul.u32 16, %s23
      %p227 = scmp.lt.s32.totalorder %s21, 1
      %s228 = scalar_select %p227, %s21, 1
      %p229 = scmp.lt.s32.totalorder %s226, 63
      %s230 = scalar_select %p229, %s226, 63
      %p231 = scmp.lt.s32.totalorder %s22, 0
      %s232 = scalar_select %p231, %s22, 0
      %s233 = sadd.s32 %s232, %s230
      %s234 = smul.addr %s228, 64
      %s235 = sadd.s32 %s233, %s234
      %s236 = smul.addr %s235, 8
      %s237 = scalar_lea.vmem %s3, %s236
      %p238 = pneg %p165
      %p239 = pneg %p162
      %s240 = smul.u32 %s21, 4
      %s241 = sadd.s32 %s240, %s23
      %p242 = scmp.lt.s32.totalorder %s241, 7
      %s243 = scalar_select %p242, %s241, 7
      %p244 = scmp.lt.s32.totalorder %s22, 0
      %s245 = scalar_select %p244, %s22, 0
      %s246 = sadd.s32 %s245, %s243
      %s247 = smul.addr %s246, 2
      %s248 = scalar_lea.vmem %s4, %s247
      %p249 = scmp.lt.s32.totalorder %s21, 1
      %s250 = scalar_select %p249, %s21, 1
      %s251 = smul.addr %s250, 72
      %s252 = smul.addr %s251, 4
      %s253 = scalar_lea.vmem %s0, %s252
      %p254 = scmp.lt.s32.totalorder %s22, 0
      %s255 = scalar_select %p254, %s22, 0
      %s256 = smul.addr %s255, 4
      %s257 = scalar_lea.vmem %s1, %s256
      %s258 = smul.u32 16, %s23
      %p259 = scmp.lt.s32.totalorder %s21, 1
      %s260 = scalar_select %p259, %s21, 1
      %p261 = scmp.lt.s32.totalorder %s258, 63
      %s262 = scalar_select %p261, %s258, 63
      %p263 = scmp.lt.s32.totalorder %s22, 0
      %s264 = scalar_select %p263, %s22, 0
      %s265 = sadd.s32 %s264, %s262
      %s266 = smul.addr %s260, 64
      %s267 = sadd.s32 %s265, %s266
      %s268 = smul.addr %s267, 8
      %s269 = scalar_lea.vmem %s3, %s268
      %s270 = smul.u32 16, %s23
      %s271 = smul.u32 %s21, 4
      %s272 = sadd.s32 %s271, %s23
      %p273 = scmp.lt.s32.totalorder %s272, 7
      %s274 = scalar_select %p273, %s272, 7
      %p275 = scmp.lt.s32.totalorder %s22, 0
      %s276 = scalar_select %p275, %s22, 0
      %s277 = sadd.s32 %s276, %s274
      %s278 = smul.addr %s277, 2
      %s279 = scalar_lea.vmem %s4, %s278
      %s280 = smul.u32 %s21, 4
      %s281 = sadd.s32 %s280, %s23
      %s283 = smul.u32 %s23, 128
      %s284 = sshra.s32 %s283, 3
      %s285 = sand.u32 %s283, 7
      %s286 = smul.addr %s284, 4
      %s287 = scalar_lea.vmem %s253, %s286
      %v288 = vld [vmem:[%s287] sm:$0xf]
      %v289 = vld [vmem:[%s287 + $0x4] sm:$0xf]
      %v290 = vld [vmem:[%s287 + $0x8] sm:$0xf]
      %v291 = vld [vmem:[%s287 + $0xc] sm:$0xf]
      %v292 = vld [vmem:[%s287 + $0x10] sm:$0xf]
      %v293 = vld [vmem:[%s287 + $0x14] sm:$0xf]
      %v294 = vld [vmem:[%s287 + $0x18] sm:$0xf]
      %v295 = vld [vmem:[%s287 + $0x1c] sm:$0xf]
      %v296 = vld [vmem:[%s287 + $0x20] sm:$0xf]
      %v297 = vld [vmem:[%s287 + $0x24] sm:$0xf]
      %v298 = vld [vmem:[%s287 + $0x28] sm:$0xf]
      %v299 = vld [vmem:[%s287 + $0x2c] sm:$0xf]
      %v300 = vld [vmem:[%s287 + $0x30] sm:$0xf]
      %v301 = vld [vmem:[%s287 + $0x34] sm:$0xf]
      %v302 = vld [vmem:[%s287 + $0x38] sm:$0xf]
      %v303 = vld [vmem:[%s287 + $0x3c] sm:$0xf]
      %v304 = vld [vmem:[%s257] sm:$0xf]
      %v305 = vld [vmem:[%s257 + $0x4] sm:$0xf]
      %v306 = vld [vmem:[%s257 + $0x8] sm:$0xf]
      %v307 = vld [vmem:[%s257 + $0xc] sm:$0xf]
      %v308 = vld [vmem:[%s257 + $0x10] sm:$0xf]
      %v309 = vld [vmem:[%s257 + $0x14] sm:$0xf]
      %v310 = vld [vmem:[%s257 + $0x18] sm:$0xf]
      %v311 = vld [vmem:[%s257 + $0x1c] sm:$0xf]
      %v312 = vld [vmem:[%s257 + $0x20] sm:$0xf]
      %v313 = vld [vmem:[%s257 + $0x24] sm:$0xf]
      %v314 = vld [vmem:[%s257 + $0x28] sm:$0xf]
      %v315 = vld [vmem:[%s257 + $0x2c] sm:$0xf]
      %s316 = sadd.s32 %s283, 32
      %s317 = sshra.s32 %s316, 3
      %s318 = sand.u32 %s316, 7
      %s319 = smul.addr %s317, 4
      %s320 = scalar_lea.vmem %s253, %s319
      %v321 = vld [vmem:[%s320] sm:$0xf]
      %v322 = vld [vmem:[%s320 + $0x4] sm:$0xf]
      %v323 = vld [vmem:[%s320 + $0x8] sm:$0xf]
      %v324 = vld [vmem:[%s320 + $0xc] sm:$0xf]
      %v325 = vld [vmem:[%s320 + $0x10] sm:$0xf]
      %v326 = vld [vmem:[%s320 + $0x14] sm:$0xf]
      %v327 = vld [vmem:[%s320 + $0x18] sm:$0xf]
      %v328 = vld [vmem:[%s320 + $0x1c] sm:$0xf]
      %v329 = vld [vmem:[%s320 + $0x20] sm:$0xf]
      %v330 = vld [vmem:[%s320 + $0x24] sm:$0xf]
      %v331 = vld [vmem:[%s320 + $0x28] sm:$0xf]
      %v332 = vld [vmem:[%s320 + $0x2c] sm:$0xf]
      %v333 = vld [vmem:[%s320 + $0x30] sm:$0xf]
      %v334 = vld [vmem:[%s320 + $0x34] sm:$0xf]
      %v335 = vld [vmem:[%s320 + $0x38] sm:$0xf]
      %v336 = vld [vmem:[%s320 + $0x3c] sm:$0xf]
      %s337 = scalar_lea.vmem %s257, 48
      %v338 = vld [vmem:[%s337] sm:$0xf]
      %v339 = vld [vmem:[%s337 + $0x4] sm:$0xf]
      %v340 = vld [vmem:[%s337 + $0x8] sm:$0xf]
      %v341 = vld [vmem:[%s337 + $0xc] sm:$0xf]
      %v342 = vld [vmem:[%s337 + $0x10] sm:$0xf]
      %v343 = vld [vmem:[%s337 + $0x14] sm:$0xf]
      %v344 = vld [vmem:[%s337 + $0x18] sm:$0xf]
      %v345 = vld [vmem:[%s337 + $0x1c] sm:$0xf]
      %v346 = vld [vmem:[%s337 + $0x20] sm:$0xf]
      %v347 = vld [vmem:[%s337 + $0x24] sm:$0xf]
      %v348 = vld [vmem:[%s337 + $0x28] sm:$0xf]
      %v349 = vld [vmem:[%s337 + $0x2c] sm:$0xf]
      %v366 = vunpack.c.l.b16 %v321
      %v367 = vunpack.c.l.b16 %v322
      %v368 = vunpack.c.l.b16 %v323
      %v369 = vunpack.c.l.b16 %v324
      %v370 = vunpack.c.l.b16 %v325
      %v371 = vunpack.c.l.b16 %v326
      %v372 = vunpack.c.l.b16 %v327
      %v373 = vunpack.c.l.b16 %v328
      %v374 = vunpack.c.l.b16 %v329
      %v375 = vunpack.c.l.b16 %v330
      %v376 = vunpack.c.l.b16 %v331
      %v377 = vunpack.c.l.b16 %v332
      %v378 = vunpack.c.l.b16 %v333
      %v379 = vunpack.c.l.b16 %v334
      %v380 = vunpack.c.l.b16 %v335
      %v381 = vunpack.c.l.b16 %v336
      %v382 = vpack.c.b16 %v367, %v366
      %v383 = vpack.c.b16 %v369, %v368
      %v384 = vpack.c.b16 %v371, %v370
      %v385 = vpack.c.b16 %v373, %v372
      %v386 = vpack.c.b16 %v375, %v374
      %v387 = vpack.c.b16 %v377, %v376
      %v388 = vpack.c.b16 %v379, %v378
      %v389 = vpack.c.b16 %v381, %v380
      %v402 = vunpack.c.l.b16 %v338
      %v403 = vunpack.c.l.b16 %v339
      %v404 = vunpack.c.l.b16 %v340
      %v405 = vunpack.c.l.b16 %v341
      %v406 = vunpack.c.l.b16 %v342
      %v407 = vunpack.c.l.b16 %v343
      %v408 = vunpack.c.l.b16 %v344
      %v409 = vunpack.c.l.b16 %v345
      %v410 = vunpack.c.l.b16 %v346
      %v411 = vunpack.c.l.b16 %v347
      %v412 = vunpack.c.l.b16 %v348
      %v413 = vunpack.c.l.b16 %v349
      %v414 = vpack.c.b16 %v403, %v402
      %v415 = vpack.c.b16 %v405, %v404
      %v416 = vpack.c.b16 %v407, %v406
      %v417 = vpack.c.b16 %v409, %v408
      %v418 = vpack.c.b16 %v411, %v410
      %v419 = vpack.c.b16 %v413, %v412
      %vm426 = vcmask 785408
      %v428 = vsel %vm426, %v382, 0
      %v431 = vsel %vm426, %v383, 0
      %v434 = vsel %vm426, %v384, 0
      %v437 = vsel %vm426, %v385, 0
      %v440 = vsel %vm426, %v386, 0
      %v443 = vsel %vm426, %v387, 0
      %v446 = vsel %vm426, %v388, 0
      %v449 = vsel %vm426, %v389, 0
      %451 = vmatprep.subr.bf16.mxu0 0
      %452 = vmatpush1.bf16.msra.mxu0 %v414
      %453 = vmatprep.subr.bf16.mxu0 0
      %454 = vmatpush1.bf16.msra.mxu0 %v415
      %455 = vmatprep.subr.bf16.mxu0 0
      %456 = vmatpush1.bf16.msra.mxu0 %v416
      %457 = vmatprep.subr.bf16.mxu0 0
      %458 = vmatpush1.bf16.msra.mxu0 %v417
      %459 = vmatprep.subr.bf16.mxu0 0
      %460 = vmatpush1.bf16.msra.mxu0 %v418
      %461 = vmatprep.subr.bf16.mxu0 0
      %462 = vmatpush1.bf16.msra.mxu0 %v419
      %463 = vmatprep.subr.bf16.mxu0 0
      %464 = vmatpush1.bf16.msra.mxu0 0
      %465 = vmatprep.subr.bf16.mxu0 0
      %466 = vmatpush1.bf16.msra.mxu0 0
      %467 = vmatprep.subr.bf16.mxu0 0
      %468 = vmatpush1.bf16.msra.mxu0 0
      %469 = vmatprep.subr.bf16.mxu0 0
      %470 = vmatpush1.bf16.msra.mxu0 0
      %471 = vmatprep.subr.bf16.mxu0 0
      %472 = vmatpush1.bf16.msra.mxu0 0
      %473 = vmatprep.subr.bf16.mxu0 0
      %474 = vmatpush1.bf16.msra.mxu0 0
      %475 = vmatprep.subr.bf16.mxu0 0
      %476 = vmatpush1.bf16.msra.mxu0 0
      %477 = vmatprep.subr.bf16.mxu0 0
      %478 = vmatpush1.bf16.msra.mxu0 0
      %479 = vmatprep.subr.bf16.mxu0 0
      %480 = vmatpush1.bf16.msra.mxu0 0
      %481 = vmatprep.subr.bf16.mxu0 0
      %482 = vmatpush1.bf16.msra.mxu0 0
      %483 = vmatprep.mubr.bf16.mxu0 0
      %484 = vmatmul.mubr.bf16.gmra.mrb[0].mxu0 %v428
      %v485 = vpop.f32.mrb[0].mxu0
      %v486 = vadd.f32 0.0, %v485
      %v487 = vpop.f32.mrb[0].mxu0
      %v488 = vpop.f32.mrb[0].mxu0
      %v489 = vadd.f32 0.0, %v488
      %v490 = vpop.f32.mrb[0].mxu0
      %491 = vmatprep.mubr.bf16.mxu0 0
      %492 = vmatmul.mubr.bf16.gmra.mrb[0].mxu0 %v431
      %v493 = vpop.f32.mrb[0].mxu0
      %v494 = vadd.f32 0.0, %v493
      %v495 = vpop.f32.mrb[0].mxu0
      %v496 = vpop.f32.mrb[0].mxu0
      %v497 = vadd.f32 0.0, %v496
      %v498 = vpop.f32.mrb[0].mxu0
      %499 = vmatprep.mubr.bf16.mxu0 0
      %500 = vmatmul.mubr.bf16.gmra.mrb[0].mxu0 %v434
      %v501 = vpop.f32.mrb[0].mxu0
      %v502 = vadd.f32 0.0, %v501
      %v503 = vpop.f32.mrb[0].mxu0
      %v504 = vpop.f32.mrb[0].mxu0
      %v505 = vadd.f32 0.0, %v504
      %v506 = vpop.f32.mrb[0].mxu0
      %507 = vmatprep.mubr.bf16.mxu0 0
      %508 = vmatmul.mubr.bf16.gmra.mrb[0].mxu0 %v437
      %v509 = vpop.f32.mrb[0].mxu0
      %v510 = vadd.f32 0.0, %v509
      %v511 = vpop.f32.mrb[0].mxu0
      %v512 = vpop.f32.mrb[0].mxu0
      %v513 = vadd.f32 0.0, %v512
      %v514 = vpop.f32.mrb[0].mxu0
      %515 = vmatprep.mubr.bf16.mxu0 0
      %516 = vmatmul.mubr.bf16.gmra.mrb[0].mxu0 %v440
      %v517 = vpop.f32.mrb[0].mxu0
      %v518 = vadd.f32 0.0, %v517
      %v519 = vpop.f32.mrb[0].mxu0
      %v520 = vpop.f32.mrb[0].mxu0
      %v521 = vadd.f32 0.0, %v520
      %v522 = vpop.f32.mrb[0].mxu0
      %523 = vmatprep.mubr.bf16.mxu0 0
      %524 = vmatmul.mubr.bf16.gmra.mrb[0].mxu0 %v443
      %v525 = vpop.f32.mrb[0].mxu0
      %v526 = vadd.f32 0.0, %v525
      %v527 = vpop.f32.mrb[0].mxu0
      %v528 = vpop.f32.mrb[0].mxu0
      %v529 = vadd.f32 0.0, %v528
      %v530 = vpop.f32.mrb[0].mxu0
      %531 = vmatprep.mubr.bf16.mxu0 0
      %532 = vmatmul.mubr.bf16.gmra.mrb[0].mxu0 %v446
      %v533 = vpop.f32.mrb[0].mxu0
      %v534 = vadd.f32 0.0, %v533
      %v535 = vpop.f32.mrb[0].mxu0
      %v536 = vpop.f32.mrb[0].mxu0
      %v537 = vadd.f32 0.0, %v536
      %v538 = vpop.f32.mrb[0].mxu0
      %539 = vmatprep.mubr.bf16.mxu0 0
      %540 = vmatmul.mubr.bf16.gmra.mrb[0].mxu0 %v449
      %v541 = vpop.f32.mrb[0].mxu0
      %v542 = vadd.f32 0.0, %v541
      %v543 = vpop.f32.mrb[0].mxu0
      %v544 = vpop.f32.mrb[0].mxu0
      %v545 = vadd.f32 0.0, %v544
      %v546 = vpop.f32.mrb[0].mxu0
      %547 = vdwg.mxu0
      %v564 = vunpack.c.l.b16 %v288
      %v565 = vunpack.c.l.b16 %v289
      %v566 = vunpack.c.l.b16 %v290
      %v567 = vunpack.c.l.b16 %v291
      %v568 = vunpack.c.l.b16 %v292
      %v569 = vunpack.c.l.b16 %v293
      %v570 = vunpack.c.l.b16 %v294
      %v571 = vunpack.c.l.b16 %v295
      %v572 = vunpack.c.l.b16 %v296
      %v573 = vunpack.c.l.b16 %v297
      %v574 = vunpack.c.l.b16 %v298
      %v575 = vunpack.c.l.b16 %v299
      %v576 = vunpack.c.l.b16 %v300
      %v577 = vunpack.c.l.b16 %v301
      %v578 = vunpack.c.l.b16 %v302
      %v579 = vunpack.c.l.b16 %v303
      %v580 = vpack.c.b16 %v565, %v564
      %v581 = vpack.c.b16 %v567, %v566
      %v582 = vpack.c.b16 %v569, %v568
      %v583 = vpack.c.b16 %v571, %v570
      %v584 = vpack.c.b16 %v573, %v572
      %v585 = vpack.c.b16 %v575, %v574
      %v586 = vpack.c.b16 %v577, %v576
      %v587 = vpack.c.b16 %v579, %v578
      %v600 = vunpack.c.l.b16 %v304
      %v601 = vunpack.c.l.b16 %v305
      %v602 = vunpack.c.l.b16 %v306
      %v603 = vunpack.c.l.b16 %v307
      %v604 = vunpack.c.l.b16 %v308
      %v605 = vunpack.c.l.b16 %v309
      %v606 = vunpack.c.l.b16 %v310
      %v607 = vunpack.c.l.b16 %v311
      %v608 = vunpack.c.l.b16 %v312
      %v609 = vunpack.c.l.b16 %v313
      %v610 = vunpack.c.l.b16 %v314
      %v611 = vunpack.c.l.b16 %v315
      %v612 = vpack.c.b16 %v601, %v600
      %v613 = vpack.c.b16 %v603, %v602
      %v614 = vpack.c.b16 %v605, %v604
      %v615 = vpack.c.b16 %v607, %v606
      %v616 = vpack.c.b16 %v609, %v608
      %v617 = vpack.c.b16 %v611, %v610
      %v625 = vsel %vm426, %v580, 0
      %v628 = vsel %vm426, %v581, 0
      %v631 = vsel %vm426, %v582, 0
      %v634 = vsel %vm426, %v583, 0
      %v637 = vsel %vm426, %v584, 0
      %v640 = vsel %vm426, %v585, 0
      %v643 = vsel %vm426, %v586, 0
      %v646 = vsel %vm426, %v587, 0
      %648 = vmatprep.subr.bf16.mxu0 0
      %649 = vmatpush1.bf16.msra.mxu0 %v612
      %650 = vmatprep.subr.bf16.mxu0 0
      %651 = vmatpush1.bf16.msra.mxu0 %v613
      %652 = vmatprep.subr.bf16.mxu0 0
      %653 = vmatpush1.bf16.msra.mxu0 %v614
      %654 = vmatprep.subr.bf16.mxu0 0
      %655 = vmatpush1.bf16.msra.mxu0 %v615
      %656 = vmatprep.subr.bf16.mxu0 0
      %657 = vmatpush1.bf16.msra.mxu0 %v616
      %658 = vmatprep.subr.bf16.mxu0 0
      %659 = vmatpush1.bf16.msra.mxu0 %v617
      %660 = vmatprep.subr.bf16.mxu0 0
      %661 = vmatpush1.bf16.msra.mxu0 0
      %662 = vmatprep.subr.bf16.mxu0 0
      %663 = vmatpush1.bf16.msra.mxu0 0
      %664 = vmatprep.subr.bf16.mxu0 0
      %665 = vmatpush1.bf16.msra.mxu0 0
      %666 = vmatprep.subr.bf16.mxu0 0
      %667 = vmatpush1.bf16.msra.mxu0 0
      %668 = vmatprep.subr.bf16.mxu0 0
      %669 = vmatpush1.bf16.msra.mxu0 0
      %670 = vmatprep.subr.bf16.mxu0 0
      %671 = vmatpush1.bf16.msra.mxu0 0
      %672 = vmatprep.subr.bf16.mxu0 0
      %673 = vmatpush1.bf16.msra.mxu0 0
      %674 = vmatprep.subr.bf16.mxu0 0
      %675 = vmatpush1.bf16.msra.mxu0 0
      %676 = vmatprep.subr.bf16.mxu0 0
      %677 = vmatpush1.bf16.msra.mxu0 0
      %678 = vmatprep.subr.bf16.mxu0 0
      %679 = vmatpush1.bf16.msra.mxu0 0
      %680 = vmatprep.mubr.bf16.mxu0 0
      %681 = vmatmul.mubr.bf16.gmra.mrb[0].mxu0 %v625
      %v682 = vpop.f32.mrb[0].mxu0
      %v683 = vadd.f32 %v486, %v682
      %v684 = vpop.f32.mrb[0].mxu0
      %v685 = vpop.f32.mrb[0].mxu0
      %v686 = vadd.f32 %v489, %v685
      %v687 = vpop.f32.mrb[0].mxu0
      %688 = vmatprep.mubr.bf16.mxu0 0
      %689 = vmatmul.mubr.bf16.gmra.mrb[0].mxu0 %v628
      %v690 = vpop.f32.mrb[0].mxu0
      %v691 = vadd.f32 %v494, %v690
      %v692 = vpop.f32.mrb[0].mxu0
      %v693 = vpop.f32.mrb[0].mxu0
      %v694 = vadd.f32 %v497, %v693
      %v695 = vpop.f32.mrb[0].mxu0
      %696 = vmatprep.mubr.bf16.mxu0 0
      %697 = vmatmul.mubr.bf16.gmra.mrb[0].mxu0 %v631
      %v698 = vpop.f32.mrb[0].mxu0
      %v699 = vadd.f32 %v502, %v698
      %v700 = vpop.f32.mrb[0].mxu0
      %v701 = vpop.f32.mrb[0].mxu0
      %v702 = vadd.f32 %v505, %v701
      %v703 = vpop.f32.mrb[0].mxu0
      %704 = vmatprep.mubr.bf16.mxu0 0
      %705 = vmatmul.mubr.bf16.gmra.mrb[0].mxu0 %v634
      %v706 = vpop.f32.mrb[0].mxu0
      %v707 = vadd.f32 %v510, %v706
      %v708 = vpop.f32.mrb[0].mxu0
      %v709 = vpop.f32.mrb[0].mxu0
      %v710 = vadd.f32 %v513, %v709
      %v711 = vpop.f32.mrb[0].mxu0
      %712 = vmatprep.mubr.bf16.mxu0 0
      %713 = vmatmul.mubr.bf16.gmra.mrb[0].mxu0 %v637
      %v714 = vpop.f32.mrb[0].mxu0
      %v715 = vadd.f32 %v518, %v714
      %v716 = vpop.f32.mrb[0].mxu0
      %v717 = vpop.f32.mrb[0].mxu0
      %v718 = vadd.f32 %v521, %v717
      %v719 = vpop.f32.mrb[0].mxu0
      %720 = vmatprep.mubr.bf16.mxu0 0
      %721 = vmatmul.mubr.bf16.gmra.mrb[0].mxu0 %v640
      %v722 = vpop.f32.mrb[0].mxu0
      %v723 = vadd.f32 %v526, %v722
      %v724 = vpop.f32.mrb[0].mxu0
      %v725 = vpop.f32.mrb[0].mxu0
      %v726 = vadd.f32 %v529, %v725
      %v727 = vpop.f32.mrb[0].mxu0
      %728 = vmatprep.mubr.bf16.mxu0 0
      %729 = vmatmul.mubr.bf16.gmra.mrb[0].mxu0 %v643
      %v730 = vpop.f32.mrb[0].mxu0
      %v731 = vadd.f32 %v534, %v730
      %v732 = vpop.f32.mrb[0].mxu0
      %v733 = vpop.f32.mrb[0].mxu0
      %v734 = vadd.f32 %v537, %v733
      %v735 = vpop.f32.mrb[0].mxu0
      %736 = vmatprep.mubr.bf16.mxu0 0
      %737 = vmatmul.mubr.bf16.gmra.mrb[0].mxu0 %v646
      %v738 = vpop.f32.mrb[0].mxu0
      %v739 = vadd.f32 %v542, %v738
      %v740 = vpop.f32.mrb[0].mxu0
      %v741 = vpop.f32.mrb[0].mxu0
      %v742 = vadd.f32 %v545, %v741
      %v743 = vpop.f32.mrb[0].mxu0
      %744 = vdwg.mxu0
      %s745 = sadd.s32 %s283, 64
      %s746 = sshra.s32 %s745, 3
      %s747 = sand.u32 %s745, 7
      %s748 = smul.addr %s746, 4
      %s749 = scalar_lea.vmem %s253, %s748
      %v750 = vld [vmem:[%s749] sm:$0xf]
      %v751 = vld [vmem:[%s749 + $0x4] sm:$0xf]
      %v752 = vld [vmem:[%s749 + $0x8] sm:$0xf]
      %v753 = vld [vmem:[%s749 + $0xc] sm:$0xf]
      %v754 = vld [vmem:[%s749 + $0x10] sm:$0xf]
      %v755 = vld [vmem:[%s749 + $0x14] sm:$0xf]
      %v756 = vld [vmem:[%s749 + $0x18] sm:$0xf]
      %v757 = vld [vmem:[%s749 + $0x1c] sm:$0xf]
      %v758 = vld [vmem:[%s749 + $0x20] sm:$0xf]
      %v759 = vld [vmem:[%s749 + $0x24] sm:$0xf]
      %v760 = vld [vmem:[%s749 + $0x28] sm:$0xf]
      %v761 = vld [vmem:[%s749 + $0x2c] sm:$0xf]
      %v762 = vld [vmem:[%s749 + $0x30] sm:$0xf]
      %v763 = vld [vmem:[%s749 + $0x34] sm:$0xf]
      %v764 = vld [vmem:[%s749 + $0x38] sm:$0xf]
      %v765 = vld [vmem:[%s749 + $0x3c] sm:$0xf]
      %s766 = scalar_lea.vmem %s257, 96
      %v767 = vld [vmem:[%s766] sm:$0xf]
      %v768 = vld [vmem:[%s766 + $0x4] sm:$0xf]
      %v769 = vld [vmem:[%s766 + $0x8] sm:$0xf]
      %v770 = vld [vmem:[%s766 + $0xc] sm:$0xf]
      %v771 = vld [vmem:[%s766 + $0x10] sm:$0xf]
      %v772 = vld [vmem:[%s766 + $0x14] sm:$0xf]
      %v773 = vld [vmem:[%s766 + $0x18] sm:$0xf]
      %v774 = vld [vmem:[%s766 + $0x1c] sm:$0xf]
      %v775 = vld [vmem:[%s766 + $0x20] sm:$0xf]
      %v776 = vld [vmem:[%s766 + $0x24] sm:$0xf]
      %v777 = vld [vmem:[%s766 + $0x28] sm:$0xf]
      %v778 = vld [vmem:[%s766 + $0x2c] sm:$0xf]
      %v795 = vunpack.c.l.b16 %v750
      %v796 = vunpack.c.l.b16 %v751
      %v797 = vunpack.c.l.b16 %v752
      %v798 = vunpack.c.l.b16 %v753
      %v799 = vunpack.c.l.b16 %v754
      %v800 = vunpack.c.l.b16 %v755
      %v801 = vunpack.c.l.b16 %v756
      %v802 = vunpack.c.l.b16 %v757
      %v803 = vunpack.c.l.b16 %v758
      %v804 = vunpack.c.l.b16 %v759
      %v805 = vunpack.c.l.b16 %v760
      %v806 = vunpack.c.l.b16 %v761
      %v807 = vunpack.c.l.b16 %v762
      %v808 = vunpack.c.l.b16 %v763
      %v809 = vunpack.c.l.b16 %v764
      %v810 = vunpack.c.l.b16 %v765
      %v811 = vpack.c.b16 %v796, %v795
      %v812 = vpack.c.b16 %v798, %v797
      %v813 = vpack.c.b16 %v800, %v799
      %v814 = vpack.c.b16 %v802, %v801
      %v815 = vpack.c.b16 %v804, %v803
      %v816 = vpack.c.b16 %v806, %v805
      %v817 = vpack.c.b16 %v808, %v807
      %v818 = vpack.c.b16 %v810, %v809
      %v831 = vunpack.c.l.b16 %v767
      %v832 = vunpack.c.l.b16 %v768
      %v833 = vunpack.c.l.b16 %v769
      %v834 = vunpack.c.l.b16 %v770
      %v835 = vunpack.c.l.b16 %v771
      %v836 = vunpack.c.l.b16 %v772
      %v837 = vunpack.c.l.b16 %v773
      %v838 = vunpack.c.l.b16 %v774
      %v839 = vunpack.c.l.b16 %v775
      %v840 = vunpack.c.l.b16 %v776
      %v841 = vunpack.c.l.b16 %v777
      %v842 = vunpack.c.l.b16 %v778
      %v843 = vpack.c.b16 %v832, %v831
      %v844 = vpack.c.b16 %v834, %v833
      %v845 = vpack.c.b16 %v836, %v835
      %v846 = vpack.c.b16 %v838, %v837
      %v847 = vpack.c.b16 %v840, %v839
      %v848 = vpack.c.b16 %v842, %v841
      %v856 = vsel %vm426, %v811, 0
      %v859 = vsel %vm426, %v812, 0
      %v862 = vsel %vm426, %v813, 0
      %v865 = vsel %vm426, %v814, 0
      %v868 = vsel %vm426, %v815, 0
      %v871 = vsel %vm426, %v816, 0
      %v874 = vsel %vm426, %v817, 0
      %v877 = vsel %vm426, %v818, 0
      %879 = vmatprep.subr.bf16.mxu0 0
      %880 = vmatpush1.bf16.msra.mxu0 %v843
      %881 = vmatprep.subr.bf16.mxu0 0
      %882 = vmatpush1.bf16.msra.mxu0 %v844
      %883 = vmatprep.subr.bf16.mxu0 0
      %884 = vmatpush1.bf16.msra.mxu0 %v845
      %885 = vmatprep.subr.bf16.mxu0 0
      %886 = vmatpush1.bf16.msra.mxu0 %v846
      %887 = vmatprep.subr.bf16.mxu0 0
      %888 = vmatpush1.bf16.msra.mxu0 %v847
      %889 = vmatprep.subr.bf16.mxu0 0
      %890 = vmatpush1.bf16.msra.mxu0 %v848
      %891 = vmatprep.subr.bf16.mxu0 0
      %892 = vmatpush1.bf16.msra.mxu0 0
      %893 = vmatprep.subr.bf16.mxu0 0
      %894 = vmatpush1.bf16.msra.mxu0 0
      %895 = vmatprep.subr.bf16.mxu0 0
      %896 = vmatpush1.bf16.msra.mxu0 0
      %897 = vmatprep.subr.bf16.mxu0 0
      %898 = vmatpush1.bf16.msra.mxu0 0
      %899 = vmatprep.subr.bf16.mxu0 0
      %900 = vmatpush1.bf16.msra.mxu0 0
      %901 = vmatprep.subr.bf16.mxu0 0
      %902 = vmatpush1.bf16.msra.mxu0 0
      %903 = vmatprep.subr.bf16.mxu0 0
      %904 = vmatpush1.bf16.msra.mxu0 0
      %905 = vmatprep.subr.bf16.mxu0 0
      %906 = vmatpush1.bf16.msra.mxu0 0
      %907 = vmatprep.subr.bf16.mxu0 0
      %908 = vmatpush1.bf16.msra.mxu0 0
      %909 = vmatprep.subr.bf16.mxu0 0
      %910 = vmatpush1.bf16.msra.mxu0 0
      %911 = vmatprep.mubr.bf16.mxu0 0
      %912 = vmatmul.mubr.bf16.gmra.mrb[0].mxu0 %v856
      %v913 = vpop.f32.mrb[0].mxu0
      %v914 = vadd.f32 0.0, %v913
      %v915 = vpop.f32.mrb[0].mxu0
      %v916 = vpop.f32.mrb[0].mxu0
      %v917 = vadd.f32 0.0, %v916
      %v918 = vpop.f32.mrb[0].mxu0
      %919 = vmatprep.mubr.bf16.mxu0 0
      %920 = vmatmul.mubr.bf16.gmra.mrb[0].mxu0 %v859
      %v921 = vpop.f32.mrb[0].mxu0
      %v922 = vadd.f32 0.0, %v921
      %v923 = vpop.f32.mrb[0].mxu0
      %v924 = vpop.f32.mrb[0].mxu0
      %v925 = vadd.f32 0.0, %v924
      %v926 = vpop.f32.mrb[0].mxu0
      %927 = vmatprep.mubr.bf16.mxu0 0
      %928 = vmatmul.mubr.bf16.gmra.mrb[0].mxu0 %v862
      %v929 = vpop.f32.mrb[0].mxu0
      %v930 = vadd.f32 0.0, %v929
      %v931 = vpop.f32.mrb[0].mxu0
      %v932 = vpop.f32.mrb[0].mxu0
      %v933 = vadd.f32 0.0, %v932
      %v934 = vpop.f32.mrb[0].mxu0
      %935 = vmatprep.mubr.bf16.mxu0 0
      %936 = vmatmul.mubr.bf16.gmra.mrb[0].mxu0 %v865
      %v937 = vpop.f32.mrb[0].mxu0
      %v938 = vadd.f32 0.0, %v937
      %v939 = vpop.f32.mrb[0].mxu0
      %v940 = vpop.f32.mrb[0].mxu0
      %v941 = vadd.f32 0.0, %v940
      %v942 = vpop.f32.mrb[0].mxu0
      %943 = vmatprep.mubr.bf16.mxu0 0
      %944 = vmatmul.mubr.bf16.gmra.mrb[0].mxu0 %v868
      %v945 = vpop.f32.mrb[0].mxu0
      %v946 = vadd.f32 0.0, %v945
      %v947 = vpop.f32.mrb[0].mxu0
      %v948 = vpop.f32.mrb[0].mxu0
      %v949 = vadd.f32 0.0, %v948
      %v950 = vpop.f32.mrb[0].mxu0
      %951 = vmatprep.mubr.bf16.mxu0 0
      %952 = vmatmul.mubr.bf16.gmra.mrb[0].mxu0 %v871
      %v953 = vpop.f32.mrb[0].mxu0
      %v954 = vadd.f32 0.0, %v953
      %v955 = vpop.f32.mrb[0].mxu0
      %v956 = vpop.f32.mrb[0].mxu0
      %v957 = vadd.f32 0.0, %v956
      %v958 = vpop.f32.mrb[0].mxu0
      %959 = vmatprep.mubr.bf16.mxu0 0
      %960 = vmatmul.mubr.bf16.gmra.mrb[0].mxu0 %v874
      %v961 = vpop.f32.mrb[0].mxu0
      %v962 = vadd.f32 0.0, %v961
      %v963 = vpop.f32.mrb[0].mxu0
      %v964 = vpop.f32.mrb[0].mxu0
      %v965 = vadd.f32 0.0, %v964
      %v966 = vpop.f32.mrb[0].mxu0
      %967 = vmatprep.mubr.bf16.mxu0 0
      %968 = vmatmul.mubr.bf16.gmra.mrb[0].mxu0 %v877
      %v969 = vpop.f32.mrb[0].mxu0
      %v970 = vadd.f32 0.0, %v969
      %v971 = vpop.f32.mrb[0].mxu0
      %v972 = vpop.f32.mrb[0].mxu0
      %v973 = vadd.f32 0.0, %v972
      %v974 = vpop.f32.mrb[0].mxu0
      %975 = vdwg.mxu0
      %v976 = vadd.f32 %v683, %v914
      %v977 = vadd.f32 %v686, %v917
      %v978 = vadd.f32 %v691, %v922
      %v979 = vadd.f32 %v694, %v925
      %v980 = vadd.f32 %v699, %v930
      %v981 = vadd.f32 %v702, %v933
      %v982 = vadd.f32 %v707, %v938
      %v983 = vadd.f32 %v710, %v941
      %v984 = vadd.f32 %v715, %v946
      %v985 = vadd.f32 %v718, %v949
      %v986 = vadd.f32 %v723, %v954
      %v987 = vadd.f32 %v726, %v957
      %v988 = vadd.f32 %v731, %v962
      %v989 = vadd.f32 %v734, %v965
      %v990 = vadd.f32 %v739, %v970
      %v991 = vadd.f32 %v742, %v973
      %992 = vst [vmem:[%s269] sm:$0xff] %v976
      %993 = vst [vmem:[%s269 + $0x8] sm:$0xff] %v977
      %994 = vst [vmem:[%s269 + $0x10] sm:$0xff] %v978
      %995 = vst [vmem:[%s269 + $0x18] sm:$0xff] %v979
      %996 = vst [vmem:[%s269 + $0x20] sm:$0xff] %v980
      %997 = vst [vmem:[%s269 + $0x28] sm:$0xff] %v981
      %998 = vst [vmem:[%s269 + $0x30] sm:$0xff] %v982
      %999 = vst [vmem:[%s269 + $0x38] sm:$0xff] %v983
      %1000 = vst [vmem:[%s269 + $0x40] sm:$0xff] %v984
      %1001 = vst [vmem:[%s269 + $0x48] sm:$0xff] %v985
      %1002 = vst [vmem:[%s269 + $0x50] sm:$0xff] %v986
      %1003 = vst [vmem:[%s269 + $0x58] sm:$0xff] %v987
      %1004 = vst [vmem:[%s269 + $0x60] sm:$0xff] %v988
      %1005 = vst [vmem:[%s269 + $0x68] sm:$0xff] %v989
      %1006 = vst [vmem:[%s269 + $0x70] sm:$0xff] %v990
      %1007 = vst [vmem:[%s269 + $0x78] sm:$0xff] %v991
      %v1008 = vld [vmem:[%s2] sm:$0xff]
      %v1009 = vld [vmem:[%s2 + $0x8] sm:$0xff]
      %v1010 = vld [vmem:[%s2 + $0x10] sm:$0xff]
      %v1011 = vld [vmem:[%s2 + $0x18] sm:$0xff]
      %v1012 = vld [vmem:[%s2 + $0x20] sm:$0xff]
      %v1013 = vld [vmem:[%s2 + $0x28] sm:$0xff]
      %v1014 = vld [vmem:[%s2 + $0x30] sm:$0xff]
      %v1015 = vld [vmem:[%s2 + $0x38] sm:$0xff]
      %v1016 = vld [vmem:[%s2 + $0x40] sm:$0xff]
      %v1017 = vld [vmem:[%s2 + $0x48] sm:$0xff]
      %v1018 = vld [vmem:[%s2 + $0x50] sm:$0xff]
      %v1019 = vld [vmem:[%s2 + $0x58] sm:$0xff]
      %v1020 = vld [vmem:[%s2 + $0x60] sm:$0xff]
      %v1021 = vld [vmem:[%s2 + $0x68] sm:$0xff]
      %v1022 = vld [vmem:[%s2 + $0x70] sm:$0xff]
      %v1023 = vld [vmem:[%s2 + $0x78] sm:$0xff]
      %1025 = vset.pattern.permute.xlu0 0
      %1026 = vperm.xlu0 %1025, %v1008
      %v1027 = vpop.permute.xlu0 %1026
      %1030 = vset.pattern.permute.xlu0 0
      %1031 = vperm.xlu0 %1030, %v1009
      %v1032 = vpop.permute.xlu0 %1031
      %1035 = vset.pattern.permute.xlu0 0
      %1036 = vperm.xlu0 %1035, %v1010
      %v1037 = vpop.permute.xlu0 %1036
      %1040 = vset.pattern.permute.xlu0 0
      %1041 = vperm.xlu0 %1040, %v1011
      %v1042 = vpop.permute.xlu0 %1041
      %1045 = vset.pattern.permute.xlu0 0
      %1046 = vperm.xlu0 %1045, %v1012
      %v1047 = vpop.permute.xlu0 %1046
      %1050 = vset.pattern.permute.xlu0 0
      %1051 = vperm.xlu0 %1050, %v1013
      %v1052 = vpop.permute.xlu0 %1051
      %1055 = vset.pattern.permute.xlu0 0
      %1056 = vperm.xlu0 %1055, %v1014
      %v1057 = vpop.permute.xlu0 %1056
      %1060 = vset.pattern.permute.xlu0 0
      %1061 = vperm.xlu0 %1060, %v1015
      %v1062 = vpop.permute.xlu0 %1061
      %1065 = vset.pattern.permute.xlu0 0
      %1066 = vperm.xlu0 %1065, %v1016
      %v1067 = vpop.permute.xlu0 %1066
      %1070 = vset.pattern.permute.xlu0 0
      %1071 = vperm.xlu0 %1070, %v1017
      %v1072 = vpop.permute.xlu0 %1071
      %1075 = vset.pattern.permute.xlu0 0
      %1076 = vperm.xlu0 %1075, %v1018
      %v1077 = vpop.permute.xlu0 %1076
      %1080 = vset.pattern.permute.xlu0 0
      %1081 = vperm.xlu0 %1080, %v1019
      %v1082 = vpop.permute.xlu0 %1081
      %1085 = vset.pattern.permute.xlu0 0
      %1086 = vperm.xlu0 %1085, %v1020
      %v1087 = vpop.permute.xlu0 %1086
      %1090 = vset.pattern.permute.xlu0 0
      %1091 = vperm.xlu0 %1090, %v1021
      %v1092 = vpop.permute.xlu0 %1091
      %1095 = vset.pattern.permute.xlu0 0
      %1096 = vperm.xlu0 %1095, %v1022
      %v1097 = vpop.permute.xlu0 %1096
      %1100 = vset.pattern.permute.xlu0 0
      %1101 = vperm.xlu0 %1100, %v1023
      %v1102 = vpop.permute.xlu0 %1101
      %v1104 = vmul.f32 %v976, %v1027
      %v1105 = vmul.f32 %v977, %v1032
      %v1106 = vmul.f32 %v978, %v1037
      %v1107 = vmul.f32 %v979, %v1042
      %v1108 = vmul.f32 %v980, %v1047
      %v1109 = vmul.f32 %v981, %v1052
      %v1110 = vmul.f32 %v982, %v1057
      %v1111 = vmul.f32 %v983, %v1062
      %v1112 = vmul.f32 %v984, %v1067
      %v1113 = vmul.f32 %v985, %v1072
      %v1114 = vmul.f32 %v986, %v1077
      %v1115 = vmul.f32 %v987, %v1082
      %v1116 = vmul.f32 %v988, %v1087
      %v1117 = vmul.f32 %v989, %v1092
      %v1118 = vmul.f32 %v990, %v1097
      %v1119 = vmul.f32 %v991, %v1102
      %v1120 = vadd.f32 %v1104, %v1105
      %v1121 = vadd.f32 %v1120, %v1106
      %v1122 = vadd.f32 %v1121, %v1107
      %v1123 = vadd.f32 %v1122, %v1108
      %v1124 = vadd.f32 %v1123, %v1109
      %v1125 = vadd.f32 %v1124, %v1110
      %v1126 = vadd.f32 %v1125, %v1111
      %v1127 = vadd.f32 %v1126, %v1112
      %v1128 = vadd.f32 %v1127, %v1113
      %v1129 = vadd.f32 %v1128, %v1114
      %v1130 = vadd.f32 %v1129, %v1115
      %v1131 = vadd.f32 %v1130, %v1116
      %v1132 = vadd.f32 %v1131, %v1117
      %v1133 = vadd.f32 %v1132, %v1118
      %v1134 = vadd.f32 %v1133, %v1119
      %v1135 = vrot.slane %v1134, 4
      %v1136 = vadd.f32 %v1134, %v1135
      %v1137 = vrot.slane %v1136, 2
      %v1138 = vadd.f32 %v1136, %v1137
      %v1139 = vrot.slane %v1138, 1
      %v1140 = vadd.f32 %v1138, %v1139
      %1141 = vst [vmem:[%s279] sm:$0x1] %v1140
      %v1142 = vmul.f32 %v1104, %v976
      %v1143 = vmul.f32 %v1105, %v977
      %v1144 = vmul.f32 %v1106, %v978
      %v1145 = vmul.f32 %v1107, %v979
      %v1146 = vmul.f32 %v1108, %v980
      %v1147 = vmul.f32 %v1109, %v981
      %v1148 = vmul.f32 %v1110, %v982
      %v1149 = vmul.f32 %v1111, %v983
      %v1150 = vmul.f32 %v1112, %v984
      %v1151 = vmul.f32 %v1113, %v985
      %v1152 = vmul.f32 %v1114, %v986
      %v1153 = vmul.f32 %v1115, %v987
      %v1154 = vmul.f32 %v1116, %v988
      %v1155 = vmul.f32 %v1117, %v989
      %v1156 = vmul.f32 %v1118, %v990
      %v1157 = vmul.f32 %v1119, %v991
      %v1158 = vadd.f32 %v1142, %v1143
      %v1159 = vadd.f32 %v1158, %v1144
      %v1160 = vadd.f32 %v1159, %v1145
      %v1161 = vadd.f32 %v1160, %v1146
      %v1162 = vadd.f32 %v1161, %v1147
      %v1163 = vadd.f32 %v1162, %v1148
      %v1164 = vadd.f32 %v1163, %v1149
      %v1165 = vadd.f32 %v1164, %v1150
      %v1166 = vadd.f32 %v1165, %v1151
      %v1167 = vadd.f32 %v1166, %v1152
      %v1168 = vadd.f32 %v1167, %v1153
      %v1169 = vadd.f32 %v1168, %v1154
      %v1170 = vadd.f32 %v1169, %v1155
      %v1171 = vadd.f32 %v1170, %v1156
      %v1172 = vadd.f32 %v1171, %v1157
      %v1173 = vrot.slane %v1172, 4
      %v1174 = vadd.f32 %v1172, %v1173
      %v1175 = vrot.slane %v1174, 2
      %v1176 = vadd.f32 %v1174, %v1175
      %v1177 = vrot.slane %v1176, 1
      %v1178 = vadd.f32 %v1176, %v1177
      %1179 = vst [vmem:[%s279 + $0x1] sm:$0x1] %v1178
      %s1180 = smul.u32 16, %s23
      %p1181 = scmp.lt.s32.totalorder %s21, 1
      %s1182 = scalar_select %p1181, %s21, 1
      %p1183 = scmp.lt.s32.totalorder %s1180, 63
      %s1184 = scalar_select %p1183, %s1180, 63
      %p1185 = scmp.lt.s32.totalorder %s22, 0
      %s1186 = scalar_select %p1185, %s22, 0
      %s1187 = sadd.s32 %s1186, %s1184
      %s1188 = smul.addr %s1182, 64
      %s1189 = sadd.s32 %s1187, %s1188
      %s1190 = smul.addr %s1189, 8
      %s1191 = scalar_lea.vmem %s3, %s1190
      %s1192 = smul.u32 %s21, 4
      %s1193 = sadd.s32 %s1192, %s23
      %p1194 = scmp.lt.s32.totalorder %s1193, 7
      %s1195 = scalar_select %p1194, %s1193, 7
      %p1196 = scmp.lt.s32.totalorder %s22, 0
      %s1197 = scalar_select %p1196, %s22, 0
      %s1198 = sadd.s32 %s1197, %s1195
      %s1199 = smul.addr %s1198, 2
      %s1200 = scalar_lea.vmem %s4, %s1199
      // Predicated region
      $region33: #{_lambda_.2} parent=31 // pred_check
        %p1201 = pneg %p130
      $region34: #{_lambda_.2} parent=31 // pred_check_branch
        %1203 = sbr.rel (%p1201) target = $region36
      $region35: #{_lambda_.2} parent=31 // pred_region
        %s1204 = smul.u32 16, %s23
      $region36: #{_lambda_.2} parent=31 // pred_fallthru
        _
      // Predicated region
      $region37: #{_lambda_.2} parent=31 // pred_check
        %p1205 = pneg %p162
      $region38: #{_lambda_.2} parent=31 // pred_check_branch
        %1207 = sbr.rel (%p1205) target = $region40
      $region39: #{_lambda_.2} parent=31 // pred_region
        %s1208 = smul.u32 %s21, 4
        %s1209 = sadd.s32 %s1208, %s23
      $region40: #{_lambda_.2} parent=31 // pred_fallthru
        _
    $region32: #{_lambda_.2} parent=5 // pred_fallthru
      _
    %p1210 = scmp.le.s32.totalorder 2, %s11
    // Predicated region
    $region41: #{_lambda_.2} parent=5 // pred_check
      %p1211 = pneg %p1210
    $region42: #{_lambda_.2} parent=5 // pred_check_branch
      %1213 = sbr.rel (%p1211) target = $region44
    $region43: #{_lambda_.2} parent=5 // pred_region
      %s1214 = ssub.s32 %s11, 2
      // Predicated region
      $region45: #{_lambda_.2} parent=43 // pred_check
        %p1215 = pneg %p136
      $region46: #{_lambda_.2} parent=43 // pred_check_branch
        %1217 = sbr.rel (%p1215) target = $region48
      $region47: #{_lambda_.2} parent=43 // pred_region
        %s1218 = smul.u32 16, %s26
        %p1219 = scmp.lt.s32.totalorder %s24, 1
        %s1220 = scalar_select %p1219, %s24, 1
        %p1221 = scmp.lt.s32.totalorder %s1218, 63
        %s1222 = scalar_select %p1221, %s1218, 63
        %p1223 = scmp.lt.s32.totalorder %s25, 0
        %s1224 = scalar_select %p1223, %s25, 0
        %s1225 = sadd.s32 %s1224, %s1222
        %s1226 = smul.addr %s1220, 64
        %s1227 = sadd.s32 %s1225, %s1226
        %s1228 = smul.addr %s1227, 8
        %s1229 = scalar_lea.vmem %s3, %s1228
      $region48: #{_lambda_.2} parent=43 // pred_fallthru
        _
      // Predicated region
      $region49: #{_lambda_.2} parent=43 // pred_check
        %p1230 = pneg %p168
      $region50: #{_lambda_.2} parent=43 // pred_check_branch
        %1232 = sbr.rel (%p1230) target = $region52
      $region51: #{_lambda_.2} parent=43 // pred_region
        %s1233 = smul.u32 %s24, 4
        %s1234 = sadd.s32 %s1233, %s26
        %p1235 = scmp.lt.s32.totalorder %s1234, 7
        %s1236 = scalar_select %p1235, %s1234, 7
        %p1237 = scmp.lt.s32.totalorder %s25, 0
        %s1238 = scalar_select %p1237, %s25, 0
        %s1239 = sadd.s32 %s1238, %s1236
        %s1240 = smul.addr %s1239, 2
        %s1241 = scalar_lea.vmem %s4, %s1240
      $region52: #{_lambda_.2} parent=43 // pred_fallthru
        _
    $region44: #{_lambda_.2} parent=5 // pred_fallthru
      _
  $region6: #{_lambda_.2} parent=0 // loop_footer
    %s15 = sadd.s32 1, %s11
  $region7: #{_lambda_.2} parent=0 // loop_footer_branch
    %10 = sbr.rel target = $region3
  $region8: #{_lambda_.2} parent=0 // loop_exit
    _

// kernel: _lambda_.3
$region0: #{_lambda_.3}
  #allocation0 [shape = 'u32[]', space=smem, size = 0x4, offset = 0x4, fixed_abs, tag = 'smem constant byte address 0x4 - core index']
  #allocation1 [shape = 'u32[144,128]{1,0:T(1,128)}', space=vmem, size = 0x12000, scoped, tag = 'internal scratch']
  %s0 = inlined_call_operand.vmem [shape: f32[1024,128], index: 0, kind: input, shape index: {}]
  %s1 = inlined_call_operand.vmem [shape: f32[1,128], index: 1, kind: input, shape index: {}]
  %s2 = inlined_call_operand.vmem [shape: f32[1,128], index: 2, kind: input, shape index: {}]
  %s3 = inlined_call_operand.vmem [shape: f32[1024,128], index: 3, kind: output, shape index: {}]
  %s4 = sld [smem:[#allocation0]]
  $region22: #{_lambda_.3} parent=0
    _
  %s6 = ssub.s32 1, %s4
  %s7 = scalar_select 0, %s6, %s4
  // Predicated region
  $region2: #{_lambda_.3} parent=0 // pred_check
    _
  $region3: #{_lambda_.3} parent=0 // pred_check_branch
    %9 = sbr.rel (0) target = $region5
  $region4: #{_lambda_.3} parent=0 // pred_region
    _
  $region5: #{_lambda_.3} parent=0 // pred_fallthru
    _
  // Predicated region
  $region6: #{_lambda_.3} parent=0 // pred_check
    _
  $region7: #{_lambda_.3} parent=0 // pred_check_branch
    %11 = sbr.rel (0) target = $region9
  $region8: #{_lambda_.3} parent=0 // pred_region
    _
  $region9: #{_lambda_.3} parent=0 // pred_fallthru
    _
  // Predicated region
  $region10: #{_lambda_.3} parent=0 // pred_check
    _
  $region11: #{_lambda_.3} parent=0 // pred_check_branch
    %13 = sbr.rel (0) target = $region13
  $region12: #{_lambda_.3} parent=0 // pred_region
    _
  $region13: #{_lambda_.3} parent=0 // pred_fallthru
    _
  %v14 = vld [vmem:[%s0] sm:$0xff]
  %v15 = vld [vmem:[%s0 + $0x8] sm:$0xff]
  %v16 = vld [vmem:[%s0 + $0x10] sm:$0xff]
  %v17 = vld [vmem:[%s0 + $0x18] sm:$0xff]
  %v18 = vld [vmem:[%s0 + $0x20] sm:$0xff]
  %v19 = vld [vmem:[%s0 + $0x28] sm:$0xff]
  %v20 = vld [vmem:[%s0 + $0x30] sm:$0xff]
  %v21 = vld [vmem:[%s0 + $0x38] sm:$0xff]
  %v22 = vld [vmem:[%s0 + $0x40] sm:$0xff]
  %v23 = vld [vmem:[%s0 + $0x48] sm:$0xff]
  %v24 = vld [vmem:[%s0 + $0x50] sm:$0xff]
  %v25 = vld [vmem:[%s0 + $0x58] sm:$0xff]
  %v26 = vld [vmem:[%s0 + $0x60] sm:$0xff]
  %v27 = vld [vmem:[%s0 + $0x68] sm:$0xff]
  %v28 = vld [vmem:[%s0 + $0x70] sm:$0xff]
  %v29 = vld [vmem:[%s0 + $0x78] sm:$0xff]
  %v30 = vld [vmem:[%s0 + $0x80] sm:$0xff]
  %v31 = vld [vmem:[%s0 + $0x88] sm:$0xff]
  %v32 = vld [vmem:[%s0 + $0x90] sm:$0xff]
  %v33 = vld [vmem:[%s0 + $0x98] sm:$0xff]
  %v34 = vld [vmem:[%s0 + $0xa0] sm:$0xff]
  %v35 = vld [vmem:[%s0 + $0xa8] sm:$0xff]
  %v36 = vld [vmem:[%s0 + $0xb0] sm:$0xff]
  %v37 = vld [vmem:[%s0 + $0xb8] sm:$0xff]
  %v38 = vld [vmem:[%s0 + $0xc0] sm:$0xff]
  %v39 = vld [vmem:[%s0 + $0xc8] sm:$0xff]
  %v40 = vld [vmem:[%s0 + $0xd0] sm:$0xff]
  %v41 = vld [vmem:[%s0 + $0xd8] sm:$0xff]
  %v42 = vld [vmem:[%s0 + $0xe0] sm:$0xff]
  %v43 = vld [vmem:[%s0 + $0xe8] sm:$0xff]
  %v44 = vld [vmem:[%s0 + $0xf0] sm:$0xff]
  %v45 = vld [vmem:[%s0 + $0xf8] sm:$0xff]
  %v46 = vld [vmem:[%s0 + $0x100] sm:$0xff]
  %v47 = vld [vmem:[%s0 + $0x108] sm:$0xff]
  %v48 = vld [vmem:[%s0 + $0x110] sm:$0xff]
  %v49 = vld [vmem:[%s0 + $0x118] sm:$0xff]
  %v50 = vld [vmem:[%s0 + $0x120] sm:$0xff]
  %v51 = vld [vmem:[%s0 + $0x128] sm:$0xff]
  %v52 = vld [vmem:[%s0 + $0x130] sm:$0xff]
  %v53 = vld [vmem:[%s0 + $0x138] sm:$0xff]
  %v54 = vld [vmem:[%s0 + $0x140] sm:$0xff]
  %v55 = vld [vmem:[%s0 + $0x148] sm:$0xff]
  %v56 = vld [vmem:[%s0 + $0x150] sm:$0xff]
  %v57 = vld [vmem:[%s0 + $0x158] sm:$0xff]
  %v58 = vld [vmem:[%s0 + $0x160] sm:$0xff]
  %v59 = vld [vmem:[%s0 + $0x168] sm:$0xff]
  %v60 = vld [vmem:[%s0 + $0x170] sm:$0xff]
  %v61 = vld [vmem:[%s0 + $0x178] sm:$0xff]
  %v62 = vld [vmem:[%s0 + $0x180] sm:$0xff]
  %v63 = vld [vmem:[%s0 + $0x188] sm:$0xff]
  %v64 = vld [vmem:[%s0 + $0x190] sm:$0xff]
  %v65 = vld [vmem:[%s0 + $0x198] sm:$0xff]
  %v66 = vld [vmem:[%s0 + $0x1a0] sm:$0xff]
  %v67 = vld [vmem:[%s0 + $0x1a8] sm:$0xff]
  %v68 = vld [vmem:[%s0 + $0x1b0] sm:$0xff]
  %v69 = vld [vmem:[%s0 + $0x1b8] sm:$0xff]
  %v70 = vld [vmem:[%s0 + $0x1c0] sm:$0xff]
  %v71 = vld [vmem:[%s0 + $0x1c8] sm:$0xff]
  %v72 = vld [vmem:[%s0 + $0x1d0] sm:$0xff]
  %v73 = vld [vmem:[%s0 + $0x1d8] sm:$0xff]
  %v74 = vld [vmem:[%s0 + $0x1e0] sm:$0xff]
  %v75 = vld [vmem:[%s0 + $0x1e8] sm:$0xff]
  %v76 = vld [vmem:[%s0 + $0x1f0] sm:$0xff]
  %v77 = vld [vmem:[%s0 + $0x1f8] sm:$0xff]
  %v78 = vld [vmem:[%s0 + $0x200] sm:$0xff]
  %v79 = vld [vmem:[%s0 + $0x208] sm:$0xff]
  %v80 = vld [vmem:[%s0 + $0x210] sm:$0xff]
  %v81 = vld [vmem:[%s0 + $0x218] sm:$0xff]
  %v82 = vld [vmem:[%s0 + $0x220] sm:$0xff]
  %v83 = vld [vmem:[%s0 + $0x228] sm:$0xff]
  %v84 = vld [vmem:[%s0 + $0x230] sm:$0xff]
  %v85 = vld [vmem:[%s0 + $0x238] sm:$0xff]
  %v86 = vld [vmem:[%s0 + $0x240] sm:$0xff]
  %v87 = vld [vmem:[%s0 + $0x248] sm:$0xff]
  %v88 = vld [vmem:[%s0 + $0x250] sm:$0xff]
  %v89 = vld [vmem:[%s0 + $0x258] sm:$0xff]
  %v90 = vld [vmem:[%s0 + $0x260] sm:$0xff]
  %v91 = vld [vmem:[%s0 + $0x268] sm:$0xff]
  %v92 = vld [vmem:[%s0 + $0x270] sm:$0xff]
  %v93 = vld [vmem:[%s0 + $0x278] sm:$0xff]
  %v94 = vld [vmem:[%s0 + $0x280] sm:$0xff]
  %v95 = vld [vmem:[%s0 + $0x288] sm:$0xff]
  %v96 = vld [vmem:[%s0 + $0x290] sm:$0xff]
  %v97 = vld [vmem:[%s0 + $0x298] sm:$0xff]
  %v98 = vld [vmem:[%s0 + $0x2a0] sm:$0xff]
  %v99 = vld [vmem:[%s0 + $0x2a8] sm:$0xff]
  %v100 = vld [vmem:[%s0 + $0x2b0] sm:$0xff]
  %v101 = vld [vmem:[%s0 + $0x2b8] sm:$0xff]
  %v102 = vld [vmem:[%s0 + $0x2c0] sm:$0xff]
  %v103 = vld [vmem:[%s0 + $0x2c8] sm:$0xff]
  %v104 = vld [vmem:[%s0 + $0x2d0] sm:$0xff]
  %v105 = vld [vmem:[%s0 + $0x2d8] sm:$0xff]
  %v106 = vld [vmem:[%s0 + $0x2e0] sm:$0xff]
  %v107 = vld [vmem:[%s0 + $0x2e8] sm:$0xff]
  %v108 = vld [vmem:[%s0 + $0x2f0] sm:$0xff]
  %v109 = vld [vmem:[%s0 + $0x2f8] sm:$0xff]
  %v110 = vld [vmem:[%s0 + $0x300] sm:$0xff]
  %v111 = vld [vmem:[%s0 + $0x308] sm:$0xff]
  %v112 = vld [vmem:[%s0 + $0x310] sm:$0xff]
  %v113 = vld [vmem:[%s0 + $0x318] sm:$0xff]
  %v114 = vld [vmem:[%s0 + $0x320] sm:$0xff]
  %v115 = vld [vmem:[%s0 + $0x328] sm:$0xff]
  %v116 = vld [vmem:[%s0 + $0x330] sm:$0xff]
  %v117 = vld [vmem:[%s0 + $0x338] sm:$0xff]
  %v118 = vld [vmem:[%s0 + $0x340] sm:$0xff]
  %v119 = vld [vmem:[%s0 + $0x348] sm:$0xff]
  %v120 = vld [vmem:[%s0 + $0x350] sm:$0xff]
  %v121 = vld [vmem:[%s0 + $0x358] sm:$0xff]
  %v122 = vld [vmem:[%s0 + $0x360] sm:$0xff]
  %v123 = vld [vmem:[%s0 + $0x368] sm:$0xff]
  %v124 = vld [vmem:[%s0 + $0x370] sm:$0xff]
  %v125 = vld [vmem:[%s0 + $0x378] sm:$0xff]
  %v126 = vld [vmem:[%s0 + $0x380] sm:$0xff]
  %v127 = vld [vmem:[%s0 + $0x388] sm:$0xff]
  %v128 = vld [vmem:[%s0 + $0x390] sm:$0xff]
  %v129 = vld [vmem:[%s0 + $0x398] sm:$0xff]
  %v130 = vld [vmem:[%s0 + $0x3a0] sm:$0xff]
  %v131 = vld [vmem:[%s0 + $0x3a8] sm:$0xff]
  %v132 = vld [vmem:[%s0 + $0x3b0] sm:$0xff]
  %v133 = vld [vmem:[%s0 + $0x3b8] sm:$0xff]
  %v134 = vld [vmem:[%s0 + $0x3c0] sm:$0xff]
  %v135 = vld [vmem:[%s0 + $0x3c8] sm:$0xff]
  %v136 = vld [vmem:[%s0 + $0x3d0] sm:$0xff]
  %v137 = vld [vmem:[%s0 + $0x3d8] sm:$0xff]
  %v138 = vld [vmem:[%s0 + $0x3e0] sm:$0xff]
  %v139 = vld [vmem:[%s0 + $0x3e8] sm:$0xff]
  %v140 = vld [vmem:[%s0 + $0x3f0] sm:$0xff]
  %v141 = vld [vmem:[%s0 + $0x3f8] sm:$0xff]
  %v142 = vld [vmem:[%s1] sm:$0x1]
  %v144 = vlaneseq
  %v145 = vshrl.u32 %v144, 7
  %v146 = vsub.s32 0, %v145
  %v147 = vrot.slane %v142, %v146
  %v149 = vmul.f32 %v14, %v147
  %v150 = vmul.f32 %v15, %v147
  %v151 = vmul.f32 %v16, %v147
  %v152 = vmul.f32 %v17, %v147
  %v153 = vmul.f32 %v18, %v147
  %v154 = vmul.f32 %v19, %v147
  %v155 = vmul.f32 %v20, %v147
  %v156 = vmul.f32 %v21, %v147
  %v157 = vmul.f32 %v22, %v147
  %v158 = vmul.f32 %v23, %v147
  %v159 = vmul.f32 %v24, %v147
  %v160 = vmul.f32 %v25, %v147
  %v161 = vmul.f32 %v26, %v147
  %v162 = vmul.f32 %v27, %v147
  %v163 = vmul.f32 %v28, %v147
  %v164 = vmul.f32 %v29, %v147
  %v165 = vmul.f32 %v30, %v147
  %v166 = vmul.f32 %v31, %v147
  %v167 = vmul.f32 %v32, %v147
  %v168 = vmul.f32 %v33, %v147
  %v169 = vmul.f32 %v34, %v147
  %v170 = vmul.f32 %v35, %v147
  %v171 = vmul.f32 %v36, %v147
  %v172 = vmul.f32 %v37, %v147
  %v173 = vmul.f32 %v38, %v147
  %v174 = vmul.f32 %v39, %v147
  %v175 = vmul.f32 %v40, %v147
  %v176 = vmul.f32 %v41, %v147
  %v177 = vmul.f32 %v42, %v147
  %v178 = vmul.f32 %v43, %v147
  %v179 = vmul.f32 %v44, %v147
  %v180 = vmul.f32 %v45, %v147
  %v181 = vmul.f32 %v46, %v147
  %v182 = vmul.f32 %v47, %v147
  %v183 = vmul.f32 %v48, %v147
  %v184 = vmul.f32 %v49, %v147
  %v185 = vmul.f32 %v50, %v147
  %v186 = vmul.f32 %v51, %v147
  %v187 = vmul.f32 %v52, %v147
  %v188 = vmul.f32 %v53, %v147
  %v189 = vmul.f32 %v54, %v147
  %v190 = vmul.f32 %v55, %v147
  %v191 = vmul.f32 %v56, %v147
  %v192 = vmul.f32 %v57, %v147
  %v193 = vmul.f32 %v58, %v147
  %v194 = vmul.f32 %v59, %v147
  %v195 = vmul.f32 %v60, %v147
  %v196 = vmul.f32 %v61, %v147
  %v197 = vmul.f32 %v62, %v147
  %v198 = vmul.f32 %v63, %v147
  %v199 = vmul.f32 %v64, %v147
  %v200 = vmul.f32 %v65, %v147
  %v201 = vmul.f32 %v66, %v147
  %v202 = vmul.f32 %v67, %v147
  %v203 = vmul.f32 %v68, %v147
  %v204 = vmul.f32 %v69, %v147
  %v205 = vmul.f32 %v70, %v147
  %v206 = vmul.f32 %v71, %v147
  %v207 = vmul.f32 %v72, %v147
  %v208 = vmul.f32 %v73, %v147
  %v209 = vmul.f32 %v74, %v147
  %v210 = vmul.f32 %v75, %v147
  %v211 = vmul.f32 %v76, %v147
  %v212 = vmul.f32 %v77, %v147
  %v213 = vmul.f32 %v78, %v147
  %v214 = vmul.f32 %v79, %v147
  %v215 = vmul.f32 %v80, %v147
  %v216 = vmul.f32 %v81, %v147
  %v217 = vmul.f32 %v82, %v147
  %v218 = vmul.f32 %v83, %v147
  %v219 = vmul.f32 %v84, %v147
  %v220 = vmul.f32 %v85, %v147
  %v221 = vmul.f32 %v86, %v147
  %v222 = vmul.f32 %v87, %v147
  %v223 = vmul.f32 %v88, %v147
  %v224 = vmul.f32 %v89, %v147
  %v225 = vmul.f32 %v90, %v147
  %v226 = vmul.f32 %v91, %v147
  %v227 = vmul.f32 %v92, %v147
  %v228 = vmul.f32 %v93, %v147
  %v229 = vmul.f32 %v94, %v147
  %v230 = vmul.f32 %v95, %v147
  %v231 = vmul.f32 %v96, %v147
  %v232 = vmul.f32 %v97, %v147
  %v233 = vmul.f32 %v98, %v147
  %v234 = vmul.f32 %v99, %v147
  %v235 = vmul.f32 %v100, %v147
  %v236 = vmul.f32 %v101, %v147
  %v237 = vmul.f32 %v102, %v147
  %v238 = vmul.f32 %v103, %v147
  %v239 = vmul.f32 %v104, %v147
  %v240 = vmul.f32 %v105, %v147
  %v241 = vmul.f32 %v106, %v147
  %v242 = vmul.f32 %v107, %v147
  %v243 = vmul.f32 %v108, %v147
  %v244 = vmul.f32 %v109, %v147
  %v245 = vmul.f32 %v110, %v147
  %v246 = vmul.f32 %v111, %v147
  %v247 = vmul.f32 %v112, %v147
  %v248 = vmul.f32 %v113, %v147
  %v249 = vmul.f32 %v114, %v147
  %v250 = vmul.f32 %v115, %v147
  %v251 = vmul.f32 %v116, %v147
  %v252 = vmul.f32 %v117, %v147
  %v253 = vmul.f32 %v118, %v147
  %v254 = vmul.f32 %v119, %v147
  %v255 = vmul.f32 %v120, %v147
  %v256 = vmul.f32 %v121, %v147
  %v257 = vmul.f32 %v122, %v147
  %v258 = vmul.f32 %v123, %v147
  %v259 = vmul.f32 %v124, %v147
  %v260 = vmul.f32 %v125, %v147
  %v261 = vmul.f32 %v126, %v147
  %v262 = vmul.f32 %v127, %v147
  %v263 = vmul.f32 %v128, %v147
  %v264 = vmul.f32 %v129, %v147
  %v265 = vmul.f32 %v130, %v147
  %v266 = vmul.f32 %v131, %v147
  %v267 = vmul.f32 %v132, %v147
  %v268 = vmul.f32 %v133, %v147
  %v269 = vmul.f32 %v134, %v147
  %v270 = vmul.f32 %v135, %v147
  %v271 = vmul.f32 %v136, %v147
  %v272 = vmul.f32 %v137, %v147
  %v273 = vmul.f32 %v138, %v147
  %v274 = vmul.f32 %v139, %v147
  %v275 = vmul.f32 %v140, %v147
  %v276 = vmul.f32 %v141, %v147
  %v277 = vld [vmem:[%s2] sm:$0x1]
  %v279 = vlaneseq
  %v280 = vshrl.u32 %v279, 7
  %v281 = vsub.s32 0, %v280
  %v282 = vrot.slane %v277, %v281
  %v284 = vadd.f32 %v149, %v282
  %v285 = vadd.f32 %v150, %v282
  %v286 = vadd.f32 %v151, %v282
  %v287 = vadd.f32 %v152, %v282
  %v288 = vadd.f32 %v153, %v282
  %v289 = vadd.f32 %v154, %v282
  %v290 = vadd.f32 %v155, %v282
  %v291 = vadd.f32 %v156, %v282
  %v292 = vadd.f32 %v157, %v282
  %v293 = vadd.f32 %v158, %v282
  %v294 = vadd.f32 %v159, %v282
  %v295 = vadd.f32 %v160, %v282
  %v296 = vadd.f32 %v161, %v282
  %v297 = vadd.f32 %v162, %v282
  %v298 = vadd.f32 %v163, %v282
  %v299 = vadd.f32 %v164, %v282
  %v300 = vadd.f32 %v165, %v282
  %v301 = vadd.f32 %v166, %v282
  %v302 = vadd.f32 %v167, %v282
  %v303 = vadd.f32 %v168, %v282
  %v304 = vadd.f32 %v169, %v282
  %v305 = vadd.f32 %v170, %v282
  %v306 = vadd.f32 %v171, %v282
  %v307 = vadd.f32 %v172, %v282
  %v308 = vadd.f32 %v173, %v282
  %v309 = vadd.f32 %v174, %v282
  %v310 = vadd.f32 %v175, %v282
  %v311 = vadd.f32 %v176, %v282
  %v312 = vadd.f32 %v177, %v282
  %v313 = vadd.f32 %v178, %v282
  %v314 = vadd.f32 %v179, %v282
  %v315 = vadd.f32 %v180, %v282
  %v316 = vadd.f32 %v181, %v282
  %v317 = vadd.f32 %v182, %v282
  %v318 = vadd.f32 %v183, %v282
  %v319 = vadd.f32 %v184, %v282
  %v320 = vadd.f32 %v185, %v282
  %v321 = vadd.f32 %v186, %v282
  %v322 = vadd.f32 %v187, %v282
  %v323 = vadd.f32 %v188, %v282
  %v324 = vadd.f32 %v189, %v282
  %v325 = vadd.f32 %v190, %v282
  %v326 = vadd.f32 %v191, %v282
  %v327 = vadd.f32 %v192, %v282
  %v328 = vadd.f32 %v193, %v282
  %v329 = vadd.f32 %v194, %v282
  %v330 = vadd.f32 %v195, %v282
  %v331 = vadd.f32 %v196, %v282
  %v332 = vadd.f32 %v197, %v282
  %v333 = vadd.f32 %v198, %v282
  %v334 = vadd.f32 %v199, %v282
  %v335 = vadd.f32 %v200, %v282
  %v336 = vadd.f32 %v201, %v282
  %v337 = vadd.f32 %v202, %v282
  %v338 = vadd.f32 %v203, %v282
  %v339 = vadd.f32 %v204, %v282
  %v340 = vadd.f32 %v205, %v282
  %v341 = vadd.f32 %v206, %v282
  %v342 = vadd.f32 %v207, %v282
  %v343 = vadd.f32 %v208, %v282
  %v344 = vadd.f32 %v209, %v282
  %v345 = vadd.f32 %v210, %v282
  %v346 = vadd.f32 %v211, %v282
  %v347 = vadd.f32 %v212, %v282
  %v348 = vadd.f32 %v213, %v282
  %v349 = vadd.f32 %v214, %v282
  %v350 = vadd.f32 %v215, %v282
  %v351 = vadd.f32 %v216, %v282
  %v352 = vadd.f32 %v217, %v282
  %v353 = vadd.f32 %v218, %v282
  %v354 = vadd.f32 %v219, %v282
  %v355 = vadd.f32 %v220, %v282
  %v356 = vadd.f32 %v221, %v282
  %v357 = vadd.f32 %v222, %v282
  %v358 = vadd.f32 %v223, %v282
  %v359 = vadd.f32 %v224, %v282
  %v360 = vadd.f32 %v225, %v282
  %v361 = vadd.f32 %v226, %v282
  %v362 = vadd.f32 %v227, %v282
  %v363 = vadd.f32 %v228, %v282
  %v364 = vadd.f32 %v229, %v282
  %v365 = vadd.f32 %v230, %v282
  %v366 = vadd.f32 %v231, %v282
  %v367 = vadd.f32 %v232, %v282
  %v368 = vadd.f32 %v233, %v282
  %v369 = vadd.f32 %v234, %v282
  %v370 = vadd.f32 %v235, %v282
  %v371 = vadd.f32 %v236, %v282
  %v372 = vadd.f32 %v237, %v282
  %v373 = vadd.f32 %v238, %v282
  %v374 = vadd.f32 %v239, %v282
  %v375 = vadd.f32 %v240, %v282
  %v376 = vadd.f32 %v241, %v282
  %v377 = vadd.f32 %v242, %v282
  %v378 = vadd.f32 %v243, %v282
  %v379 = vadd.f32 %v244, %v282
  %v380 = vadd.f32 %v245, %v282
  %v381 = vadd.f32 %v246, %v282
  %v382 = vadd.f32 %v247, %v282
  %v383 = vadd.f32 %v248, %v282
  %v384 = vadd.f32 %v249, %v282
  %v385 = vadd.f32 %v250, %v282
  %v386 = vadd.f32 %v251, %v282
  %v387 = vadd.f32 %v252, %v282
  %v388 = vadd.f32 %v253, %v282
  %v389 = vadd.f32 %v254, %v282
  %v390 = vadd.f32 %v255, %v282
  %v391 = vadd.f32 %v256, %v282
  %v392 = vadd.f32 %v257, %v282
  %v393 = vadd.f32 %v258, %v282
  %v394 = vadd.f32 %v259, %v282
  %v395 = vadd.f32 %v260, %v282
  %v396 = vadd.f32 %v261, %v282
  %v397 = vadd.f32 %v262, %v282
  %v398 = vadd.f32 %v263, %v282
  %v399 = vadd.f32 %v264, %v282
  %v400 = vadd.f32 %v265, %v282
  %v401 = vadd.f32 %v266, %v282
  %v402 = vadd.f32 %v267, %v282
  %v403 = vadd.f32 %v268, %v282
  %v404 = vadd.f32 %v269, %v282
  %v405 = vadd.f32 %v270, %v282
  %v406 = vadd.f32 %v271, %v282
  %v407 = vadd.f32 %v272, %v282
  %v408 = vadd.f32 %v273, %v282
  %v409 = vadd.f32 %v274, %v282
  %v410 = vadd.f32 %v275, %v282
  %v411 = vadd.f32 %v276, %v282
  %v412 = vmul.f32 %v284, 0.1
  %v413 = vmul.f32 %v285, 0.1
  %v414 = vmul.f32 %v286, 0.1
  %v415 = vmul.f32 %v287, 0.1
  %v416 = vmul.f32 %v288, 0.1
  %v417 = vmul.f32 %v289, 0.1
  %v418 = vmul.f32 %v290, 0.1
  %v419 = vmul.f32 %v291, 0.1
  %v420 = vmul.f32 %v292, 0.1
  %v421 = vmul.f32 %v293, 0.1
  %v422 = vmul.f32 %v294, 0.1
  %v423 = vmul.f32 %v295, 0.1
  %v424 = vmul.f32 %v296, 0.1
  %v425 = vmul.f32 %v297, 0.1
  %v426 = vmul.f32 %v298, 0.1
  %v427 = vmul.f32 %v299, 0.1
  %v428 = vmul.f32 %v300, 0.1
  %v429 = vmul.f32 %v301, 0.1
  %v430 = vmul.f32 %v302, 0.1
  %v431 = vmul.f32 %v303, 0.1
  %v432 = vmul.f32 %v304, 0.1
  %v433 = vmul.f32 %v305, 0.1
  %v434 = vmul.f32 %v306, 0.1
  %v435 = vmul.f32 %v307, 0.1
  %v436 = vmul.f32 %v308, 0.1
  %v437 = vmul.f32 %v309, 0.1
  %v438 = vmul.f32 %v310, 0.1
  %v439 = vmul.f32 %v311, 0.1
  %v440 = vmul.f32 %v312, 0.1
  %v441 = vmul.f32 %v313, 0.1
  %v442 = vmul.f32 %v314, 0.1
  %v443 = vmul.f32 %v315, 0.1
  %v444 = vmul.f32 %v316, 0.1
  %v445 = vmul.f32 %v317, 0.1
  %v446 = vmul.f32 %v318, 0.1
  %v447 = vmul.f32 %v319, 0.1
  %v448 = vmul.f32 %v320, 0.1
  %v449 = vmul.f32 %v321, 0.1
  %v450 = vmul.f32 %v322, 0.1
  %v451 = vmul.f32 %v323, 0.1
  %v452 = vmul.f32 %v324, 0.1
  %v453 = vmul.f32 %v325, 0.1
  %v454 = vmul.f32 %v326, 0.1
  %v455 = vmul.f32 %v327, 0.1
  %v456 = vmul.f32 %v328, 0.1
  %v457 = vmul.f32 %v329, 0.1
  %v458 = vmul.f32 %v330, 0.1
  %v459 = vmul.f32 %v331, 0.1
  %v460 = vmul.f32 %v332, 0.1
  %v461 = vmul.f32 %v333, 0.1
  %v462 = vmul.f32 %v334, 0.1
  %v463 = vmul.f32 %v335, 0.1
  %v464 = vmul.f32 %v336, 0.1
  %v465 = vmul.f32 %v337, 0.1
  %v466 = vmul.f32 %v338, 0.1
  %v467 = vmul.f32 %v339, 0.1
  %v468 = vmul.f32 %v340, 0.1
  %v469 = vmul.f32 %v341, 0.1
  %v470 = vmul.f32 %v342, 0.1
  %v471 = vmul.f32 %v343, 0.1
  %v472 = vmul.f32 %v344, 0.1
  %v473 = vmul.f32 %v345, 0.1
  %v474 = vmul.f32 %v346, 0.1
  %v475 = vmul.f32 %v347, 0.1
  %v476 = vmul.f32 %v348, 0.1
  %v477 = vmul.f32 %v349, 0.1
  %v478 = vmul.f32 %v350, 0.1
  %v479 = vmul.f32 %v351, 0.1
  %v480 = vmul.f32 %v352, 0.1
  %v481 = vmul.f32 %v353, 0.1
  %v482 = vmul.f32 %v354, 0.1
  %v483 = vmul.f32 %v355, 0.1
  %v484 = vmul.f32 %v356, 0.1
  %v485 = vmul.f32 %v357, 0.1
  %v486 = vmul.f32 %v358, 0.1
  %v487 = vmul.f32 %v359, 0.1
  %v488 = vmul.f32 %v360, 0.1
  %v489 = vmul.f32 %v361, 0.1
  %v490 = vmul.f32 %v362, 0.1
  %v491 = vmul.f32 %v363, 0.1
  %v492 = vmul.f32 %v364, 0.1
  %v493 = vmul.f32 %v365, 0.1
  %v494 = vmul.f32 %v366, 0.1
  %v495 = vmul.f32 %v367, 0.1
  %v496 = vmul.f32 %v368, 0.1
  %v497 = vmul.f32 %v369, 0.1
  %v498 = vmul.f32 %v370, 0.1
  %v499 = vmul.f32 %v371, 0.1
  %v500 = vmul.f32 %v372, 0.1
  %v501 = vmul.f32 %v373, 0.1
  %v502 = vmul.f32 %v374, 0.1
  %v503 = vmul.f32 %v375, 0.1
  %v504 = vmul.f32 %v376, 0.1
  %v505 = vmul.f32 %v377, 0.1
  %v506 = vmul.f32 %v378, 0.1
  %v507 = vmul.f32 %v379, 0.1
  %v508 = vmul.f32 %v380, 0.1
  %v509 = vmul.f32 %v381, 0.1
  %v510 = vmul.f32 %v382, 0.1
  %v511 = vmul.f32 %v383, 0.1
  %v512 = vmul.f32 %v384, 0.1
  %v513 = vmul.f32 %v385, 0.1
  %v514 = vmul.f32 %v386, 0.1
  %v515 = vmul.f32 %v387, 0.1
  %v516 = vmul.f32 %v388, 0.1
  %v517 = vmul.f32 %v389, 0.1
  %v518 = vmul.f32 %v390, 0.1
  %v519 = vmul.f32 %v391, 0.1
  %v520 = vmul.f32 %v392, 0.1
  %v521 = vmul.f32 %v393, 0.1
  %v522 = vmul.f32 %v394, 0.1
  %v523 = vmul.f32 %v395, 0.1
  %v524 = vmul.f32 %v396, 0.1
  %v525 = vmul.f32 %v397, 0.1
  %v526 = vmul.f32 %v398, 0.1
  %v527 = vmul.f32 %v399, 0.1
  %v528 = vmul.f32 %v400, 0.1
  %v529 = vmul.f32 %v401, 0.1
  %v530 = vmul.f32 %v402, 0.1
  %v531 = vmul.f32 %v403, 0.1
  %v532 = vmul.f32 %v404, 0.1
  %v533 = vmul.f32 %v405, 0.1
  %v534 = vmul.f32 %v406, 0.1
  %v535 = vmul.f32 %v407, 0.1
  %v536 = vmul.f32 %v408, 0.1
  %v537 = vmul.f32 %v409, 0.1
  %v538 = vmul.f32 %v410, 0.1
  %v539 = vmul.f32 %v411, 0.1
  %v540 = vmax.f32 %v284, %v412
  %v541 = vmax.f32 %v285, %v413
  %v542 = vmax.f32 %v286, %v414
  %v543 = vmax.f32 %v287, %v415
  %v544 = vmax.f32 %v288, %v416
  %v545 = vmax.f32 %v289, %v417
  %v546 = vmax.f32 %v290, %v418
  %v547 = vmax.f32 %v291, %v419
  %v548 = vmax.f32 %v292, %v420
  %v549 = vmax.f32 %v293, %v421
  %v550 = vmax.f32 %v294, %v422
  %v551 = vmax.f32 %v295, %v423
  %v552 = vmax.f32 %v296, %v424
  %v553 = vmax.f32 %v297, %v425
  %v554 = vmax.f32 %v298, %v426
  %v555 = vmax.f32 %v299, %v427
  %v556 = vmax.f32 %v300, %v428
  %v557 = vmax.f32 %v301, %v429
  %v558 = vmax.f32 %v302, %v430
  %v559 = vmax.f32 %v303, %v431
  %v560 = vmax.f32 %v304, %v432
  %v561 = vmax.f32 %v305, %v433
  %v562 = vmax.f32 %v306, %v434
  %v563 = vmax.f32 %v307, %v435
  %v564 = vmax.f32 %v308, %v436
  %v565 = vmax.f32 %v309, %v437
  %v566 = vmax.f32 %v310, %v438
  %v567 = vmax.f32 %v311, %v439
  %v568 = vmax.f32 %v312, %v440
  %v569 = vmax.f32 %v313, %v441
  %v570 = vmax.f32 %v314, %v442
  %v571 = vmax.f32 %v315, %v443
  %v572 = vmax.f32 %v316, %v444
  %v573 = vmax.f32 %v317, %v445
  %v574 = vmax.f32 %v318, %v446
  %v575 = vmax.f32 %v319, %v447
  %v576 = vmax.f32 %v320, %v448
  %v577 = vmax.f32 %v321, %v449
  %v578 = vmax.f32 %v322, %v450
  %v579 = vmax.f32 %v323, %v451
  %v580 = vmax.f32 %v324, %v452
  %v581 = vmax.f32 %v325, %v453
  %v582 = vmax.f32 %v326, %v454
  %v583 = vmax.f32 %v327, %v455
  %v584 = vmax.f32 %v328, %v456
  %v585 = vmax.f32 %v329, %v457
  %v586 = vmax.f32 %v330, %v458
  %v587 = vmax.f32 %v331, %v459
  %v588 = vmax.f32 %v332, %v460
  %v589 = vmax.f32 %v333, %v461
  %v590 = vmax.f32 %v334, %v462
  %v591 = vmax.f32 %v335, %v463
  %v592 = vmax.f32 %v336, %v464
  %v593 = vmax.f32 %v337, %v465
  %v594 = vmax.f32 %v338, %v466
  %v595 = vmax.f32 %v339, %v467
  %v596 = vmax.f32 %v340, %v468
  %v597 = vmax.f32 %v341, %v469
  %v598 = vmax.f32 %v342, %v470
  %v599 = vmax.f32 %v343, %v471
  %v600 = vmax.f32 %v344, %v472
  %v601 = vmax.f32 %v345, %v473
  %v602 = vmax.f32 %v346, %v474
  %v603 = vmax.f32 %v347, %v475
  %v604 = vmax.f32 %v348, %v476
  %v605 = vmax.f32 %v349, %v477
  %v606 = vmax.f32 %v350, %v478
  %v607 = vmax.f32 %v351, %v479
  %v608 = vmax.f32 %v352, %v480
  %v609 = vmax.f32 %v353, %v481
  %v610 = vmax.f32 %v354, %v482
  %v611 = vmax.f32 %v355, %v483
  %v612 = vmax.f32 %v356, %v484
  %v613 = vmax.f32 %v357, %v485
  %v614 = vmax.f32 %v358, %v486
  %v615 = vmax.f32 %v359, %v487
  %v616 = vmax.f32 %v360, %v488
  %v617 = vmax.f32 %v361, %v489
  %v618 = vmax.f32 %v362, %v490
  %v619 = vmax.f32 %v363, %v491
  %v620 = vmax.f32 %v364, %v492
  %v621 = vmax.f32 %v365, %v493
  %v622 = vmax.f32 %v366, %v494
  %v623 = vmax.f32 %v367, %v495
  %v624 = vmax.f32 %v368, %v496
  %v625 = vmax.f32 %v369, %v497
  %v626 = vmax.f32 %v370, %v498
  %v627 = vmax.f32 %v371, %v499
  %v628 = vmax.f32 %v372, %v500
  %v629 = vmax.f32 %v373, %v501
  %v630 = vmax.f32 %v374, %v502
  %v631 = vmax.f32 %v375, %v503
  %v632 = vmax.f32 %v376, %v504
  %v633 = vmax.f32 %v377, %v505
  %v634 = vmax.f32 %v378, %v506
  %v635 = vmax.f32 %v379, %v507
  %v636 = vmax.f32 %v380, %v508
  %v637 = vmax.f32 %v381, %v509
  %v638 = vmax.f32 %v382, %v510
  %v639 = vmax.f32 %v383, %v511
  %v640 = vmax.f32 %v384, %v512
  %v641 = vmax.f32 %v385, %v513
  %v642 = vmax.f32 %v386, %v514
  %v643 = vmax.f32 %v387, %v515
  %v644 = vmax.f32 %v388, %v516
  %v645 = vmax.f32 %v389, %v517
  %v646 = vmax.f32 %v390, %v518
  %v647 = vmax.f32 %v391, %v519
  %v648 = vmax.f32 %v392, %v520
  %v649 = vmax.f32 %v393, %v521
  %v650 = vmax.f32 %v394, %v522
  %v651 = vmax.f32 %v395, %v523
  %v652 = vmax.f32 %v396, %v524
  %v653 = vmax.f32 %v397, %v525
  %v654 = vmax.f32 %v398, %v526
  %v655 = vmax.f32 %v399, %v527
  %v656 = vmax.f32 %v400, %v528
  %v657 = vmax.f32 %v401, %v529
  %v658 = vmax.f32 %v402, %v530
  %v659 = vmax.f32 %v403, %v531
  %v660 = vmax.f32 %v404, %v532
  %v661 = vmax.f32 %v405, %v533
  %v662 = vmax.f32 %v406, %v534
  %v663 = vmax.f32 %v407, %v535
  %v664 = vmax.f32 %v408, %v536
  %v665 = vmax.f32 %v409, %v537
  %v666 = vmax.f32 %v410, %v538
  %v667 = vmax.f32 %v411, %v539
  %668 = vst [vmem:[%s3] sm:$0xff] %v540
  %669 = vst [vmem:[%s3 + $0x8] sm:$0xff] %v541
  %670 = vst [vmem:[%s3 + $0x10] sm:$0xff] %v542
  %671 = vst [vmem:[%s3 + $0x18] sm:$0xff] %v543
  %672 = vst [vmem:[%s3 + $0x20] sm:$0xff] %v544
  %673 = vst [vmem:[%s3 + $0x28] sm:$0xff] %v545
  %674 = vst [vmem:[%s3 + $0x30] sm:$0xff] %v546
  %675 = vst [vmem:[%s3 + $0x38] sm:$0xff] %v547
  %676 = vst [vmem:[%s3 + $0x40] sm:$0xff] %v548
  %677 = vst [vmem:[%s3 + $0x48] sm:$0xff] %v549
  %678 = vst [vmem:[%s3 + $0x50] sm:$0xff] %v550
  %679 = vst [vmem:[%s3 + $0x58] sm:$0xff] %v551
  %680 = vst [vmem:[%s3 + $0x60] sm:$0xff] %v552
  %681 = vst [vmem:[%s3 + $0x68] sm:$0xff] %v553
  %682 = vst [vmem:[%s3 + $0x70] sm:$0xff] %v554
  %683 = vst [vmem:[%s3 + $0x78] sm:$0xff] %v555
  %684 = vst [vmem:[%s3 + $0x80] sm:$0xff] %v556
  %685 = vst [vmem:[%s3 + $0x88] sm:$0xff] %v557
  %686 = vst [vmem:[%s3 + $0x90] sm:$0xff] %v558
  %687 = vst [vmem:[%s3 + $0x98] sm:$0xff] %v559
  %688 = vst [vmem:[%s3 + $0xa0] sm:$0xff] %v560
  %689 = vst [vmem:[%s3 + $0xa8] sm:$0xff] %v561
  %690 = vst [vmem:[%s3 + $0xb0] sm:$0xff] %v562
  %691 = vst [vmem:[%s3 + $0xb8] sm:$0xff] %v563
  %692 = vst [vmem:[%s3 + $0xc0] sm:$0xff] %v564
  %693 = vst [vmem:[%s3 + $0xc8] sm:$0xff] %v565
  %694 = vst [vmem:[%s3 + $0xd0] sm:$0xff] %v566
  %695 = vst [vmem:[%s3 + $0xd8] sm:$0xff] %v567
  %696 = vst [vmem:[%s3 + $0xe0] sm:$0xff] %v568
  %697 = vst [vmem:[%s3 + $0xe8] sm:$0xff] %v569
  %698 = vst [vmem:[%s3 + $0xf0] sm:$0xff] %v570
  %699 = vst [vmem:[%s3 + $0xf8] sm:$0xff] %v571
  %700 = vst [vmem:[%s3 + $0x100] sm:$0xff] %v572
  %701 = vst [vmem:[%s3 + $0x108] sm:$0xff] %v573
  %702 = vst [vmem:[%s3 + $0x110] sm:$0xff] %v574
  %703 = vst [vmem:[%s3 + $0x118] sm:$0xff] %v575
  %704 = vst [vmem:[%s3 + $0x120] sm:$0xff] %v576
  %705 = vst [vmem:[%s3 + $0x128] sm:$0xff] %v577
  %706 = vst [vmem:[%s3 + $0x130] sm:$0xff] %v578
  %707 = vst [vmem:[%s3 + $0x138] sm:$0xff] %v579
  %708 = vst [vmem:[%s3 + $0x140] sm:$0xff] %v580
  %709 = vst [vmem:[%s3 + $0x148] sm:$0xff] %v581
  %710 = vst [vmem:[%s3 + $0x150] sm:$0xff] %v582
  %711 = vst [vmem:[%s3 + $0x158] sm:$0xff] %v583
  %712 = vst [vmem:[%s3 + $0x160] sm:$0xff] %v584
  %713 = vst [vmem:[%s3 + $0x168] sm:$0xff] %v585
  %714 = vst [vmem:[%s3 + $0x170] sm:$0xff] %v586
  %715 = vst [vmem:[%s3 + $0x178] sm:$0xff] %v587
  %716 = vst [vmem:[%s3 + $0x180] sm:$0xff] %v588
  %717 = vst [vmem:[%s3 + $0x188] sm:$0xff] %v589
  %718 = vst [vmem:[%s3 + $0x190] sm:$0xff] %v590
  %719 = vst [vmem:[%s3 + $0x198] sm:$0xff] %v591
  %720 = vst [vmem:[%s3 + $0x1a0] sm:$0xff] %v592
  %721 = vst [vmem:[%s3 + $0x1a8] sm:$0xff] %v593
  %722 = vst [vmem:[%s3 + $0x1b0] sm:$0xff] %v594
  %723 = vst [vmem:[%s3 + $0x1b8] sm:$0xff] %v595
  %724 = vst [vmem:[%s3 + $0x1c0] sm:$0xff] %v596
  %725 = vst [vmem:[%s3 + $0x1c8] sm:$0xff] %v597
  %726 = vst [vmem:[%s3 + $0x1d0] sm:$0xff] %v598
  %727 = vst [vmem:[%s3 + $0x1d8] sm:$0xff] %v599
  %728 = vst [vmem:[%s3 + $0x1e0] sm:$0xff] %v600
  %729 = vst [vmem:[%s3 + $0x1e8] sm:$0xff] %v601
  %730 = vst [vmem:[%s3 + $0x1f0] sm:$0xff] %v602
  %731 = vst [vmem:[%s3 + $0x1f8] sm:$0xff] %v603
  %732 = vst [vmem:[%s3 + $0x200] sm:$0xff] %v604
  %733 = vst [vmem:[%s3 + $0x208] sm:$0xff] %v605
  %734 = vst [vmem:[%s3 + $0x210] sm:$0xff] %v606
  %735 = vst [vmem:[%s3 + $0x218] sm:$0xff] %v607
  %736 = vst [vmem:[%s3 + $0x220] sm:$0xff] %v608
  %737 = vst [vmem:[%s3 + $0x228] sm:$0xff] %v609
  %738 = vst [vmem:[%s3 + $0x230] sm:$0xff] %v610
  %739 = vst [vmem:[%s3 + $0x238] sm:$0xff] %v611
  %740 = vst [vmem:[%s3 + $0x240] sm:$0xff] %v612
  %741 = vst [vmem:[%s3 + $0x248] sm:$0xff] %v613
  %742 = vst [vmem:[%s3 + $0x250] sm:$0xff] %v614
  %743 = vst [vmem:[%s3 + $0x258] sm:$0xff] %v615
  %744 = vst [vmem:[%s3 + $0x260] sm:$0xff] %v616
  %745 = vst [vmem:[%s3 + $0x268] sm:$0xff] %v617
  %746 = vst [vmem:[%s3 + $0x270] sm:$0xff] %v618
  %747 = vst [vmem:[%s3 + $0x278] sm:$0xff] %v619
  %748 = vst [vmem:[%s3 + $0x280] sm:$0xff] %v620
  %749 = vst [vmem:[%s3 + $0x288] sm:$0xff] %v621
  %750 = vst [vmem:[%s3 + $0x290] sm:$0xff] %v622
  %751 = vst [vmem:[%s3 + $0x298] sm:$0xff] %v623
  %752 = vst [vmem:[%s3 + $0x2a0] sm:$0xff] %v624
  %753 = vst [vmem:[%s3 + $0x2a8] sm:$0xff] %v625
  %754 = vst [vmem:[%s3 + $0x2b0] sm:$0xff] %v626
  %755 = vst [vmem:[%s3 + $0x2b8] sm:$0xff] %v627
  %756 = vst [vmem:[%s3 + $0x2c0] sm:$0xff] %v628
  %757 = vst [vmem:[%s3 + $0x2c8] sm:$0xff] %v629
  %758 = vst [vmem:[%s3 + $0x2d0] sm:$0xff] %v630
  %759 = vst [vmem:[%s3 + $0x2d8] sm:$0xff] %v631
  %760 = vst [vmem:[%s3 + $0x2e0] sm:$0xff] %v632
  %761 = vst [vmem:[%s3 + $0x2e8] sm:$0xff] %v633
  %762 = vst [vmem:[%s3 + $0x2f0] sm:$0xff] %v634
  %763 = vst [vmem:[%s3 + $0x2f8] sm:$0xff] %v635
  %764 = vst [vmem:[%s3 + $0x300] sm:$0xff] %v636
  %765 = vst [vmem:[%s3 + $0x308] sm:$0xff] %v637
  %766 = vst [vmem:[%s3 + $0x310] sm:$0xff] %v638
  %767 = vst [vmem:[%s3 + $0x318] sm:$0xff] %v639
  %768 = vst [vmem:[%s3 + $0x320] sm:$0xff] %v640
  %769 = vst [vmem:[%s3 + $0x328] sm:$0xff] %v641
  %770 = vst [vmem:[%s3 + $0x330] sm:$0xff] %v642
  %771 = vst [vmem:[%s3 + $0x338] sm:$0xff] %v643
  %772 = vst [vmem:[%s3 + $0x340] sm:$0xff] %v644
  %773 = vst [vmem:[%s3 + $0x348] sm:$0xff] %v645
  %774 = vst [vmem:[%s3 + $0x350] sm:$0xff] %v646
  %775 = vst [vmem:[%s3 + $0x358] sm:$0xff] %v647
  %776 = vst [vmem:[%s3 + $0x360] sm:$0xff] %v648
  %777 = vst [vmem:[%s3 + $0x368] sm:$0xff] %v649
  %778 = vst [vmem:[%s3 + $0x370] sm:$0xff] %v650
  %779 = vst [vmem:[%s3 + $0x378] sm:$0xff] %v651
  %780 = vst [vmem:[%s3 + $0x380] sm:$0xff] %v652
  %781 = vst [vmem:[%s3 + $0x388] sm:$0xff] %v653
  %782 = vst [vmem:[%s3 + $0x390] sm:$0xff] %v654
  %783 = vst [vmem:[%s3 + $0x398] sm:$0xff] %v655
  %784 = vst [vmem:[%s3 + $0x3a0] sm:$0xff] %v656
  %785 = vst [vmem:[%s3 + $0x3a8] sm:$0xff] %v657
  %786 = vst [vmem:[%s3 + $0x3b0] sm:$0xff] %v658
  %787 = vst [vmem:[%s3 + $0x3b8] sm:$0xff] %v659
  %788 = vst [vmem:[%s3 + $0x3c0] sm:$0xff] %v660
  %789 = vst [vmem:[%s3 + $0x3c8] sm:$0xff] %v661
  %790 = vst [vmem:[%s3 + $0x3d0] sm:$0xff] %v662
  %791 = vst [vmem:[%s3 + $0x3d8] sm:$0xff] %v663
  %792 = vst [vmem:[%s3 + $0x3e0] sm:$0xff] %v664
  %793 = vst [vmem:[%s3 + $0x3e8] sm:$0xff] %v665
  %794 = vst [vmem:[%s3 + $0x3f0] sm:$0xff] %v666
  %795 = vst [vmem:[%s3 + $0x3f8] sm:$0xff] %v667
  // Predicated region
  $region14: #{_lambda_.3} parent=0 // pred_check
    _
  $region15: #{_lambda_.3} parent=0 // pred_check_branch
    %797 = sbr.rel (0) target = $region17
  $region16: #{_lambda_.3} parent=0 // pred_region
    _
  $region17: #{_lambda_.3} parent=0 // pred_fallthru
    _
  // Predicated region
  $region18: #{_lambda_.3} parent=0 // pred_check
    _
  $region19: #{_lambda_.3} parent=0 // pred_check_branch
    %799 = sbr.rel (0) target = $region21
  $region20: #{_lambda_.3} parent=0 // pred_region
    _
  $region21: #{_lambda_.3} parent=0 // pred_fallthru
    _

</llo_original>
